<compile_context>
chip_gen: v7x
topology: tpu7x:2x2x1
jax: 0.10.0
libtpu: 0.0.40
codegen_flags: <defaults>
</compile_context>

<pallas_src>
import jax
import jax.numpy as jnp
from jax.experimental import pallas as pl
from jax.experimental.pallas import tpu as pltpu

_SLOPE = 0.1  # LeakyReLU negative slope from the PyTorch module


def _leaky_relu(v):
    return jnp.where(v > 0, v, _SLOPE * v)


def autoencoder_kernel(x_ref,
                       w1_ref, b1_ref, w2_ref, b2_ref, w3_ref, b3_ref,
                       w4_ref, b4_ref, w5_ref, b5_ref, w6_ref, b6_ref,
                       o_ref):
    """One batch tile of the full encoder/decoder MLP."""
    h = x_ref[...]                                              # (TB, D) f32

    def dense(h, w_ref, b_ref):
        # bf16 x bf16 on the MXU, f32 accumulation, f32 bias add.
        return jnp.dot(h.astype(jnp.bfloat16), w_ref[...],
                       preferred_element_type=jnp.float32) + b_ref[...]

    # Encoder: D -> 256(200) -> 128(100) -> 128(30), LeakyReLU(0.1) each.
    h = _leaky_relu(dense(h, w1_ref, b1_ref))
    h = _leaky_relu(dense(h, w2_ref, b2_ref))
    h = _leaky_relu(dense(h, w3_ref, b3_ref))

    # Decoder: 128(30) -> 128(100) -> 256(200) -> D, LeakyReLU then Sigmoid.
    h = _leaky_relu(dense(h, w4_ref, b4_ref))
    h = _leaky_relu(dense(h, w5_ref, b5_ref))
    h = dense(h, w6_ref, b6_ref)

    # Sigmoid via EUP exp + EUP approximate reciprocal (no VALU divide).
    o_ref[...] = pl.reciprocal(1.0 + jnp.exp(-h), approx=True).astype(o_ref.dtype)


def _round_up(n, align=128):
    return ((n + align - 1) // align) * align


def init_params(key, image_size=28):
    """nn.Linear-style init (uniform +-1/sqrt(fan_in)), stored transposed
    ((in, out) so y = x @ W + b), zero-padded to lane-aligned hidden widths,
    weights cast to bf16, biases kept f32 with shape (1, out)."""
    d = image_size ** 2
    logical = [d, 200, 100, 30, 100, 200, d]
    padded = [d] + [_round_up(n) for n in logical[1:-1]] + [d]

    params = []
    for li in range(6):
        fi, fo = logical[li], logical[li + 1]
        pi, po = padded[li], padded[li + 1]
        key, kw, kb = jax.random.split(key, 3)
        bound = float(fi) ** -0.5
        w = jax.random.uniform(kw, (fi, fo), jnp.float32,
                               minval=-bound, maxval=bound)
        b = jax.random.uniform(kb, (fo,), jnp.float32,
                               minval=-bound, maxval=bound)
        # Zero padding is numerically exact (see header comment).
        w_pad = jnp.zeros((pi, po), jnp.float32).at[:fi, :fo].set(w)
        b_pad = jnp.zeros((1, po), jnp.float32).at[0, :fo].set(b)
        params.extend([w_pad.astype(jnp.bfloat16), b_pad])
    return params


def basic_autoencoder_forward(x_nchw, params, image_size=28, batch_tile=256):
    """x_nchw: (B, 1, image_size, image_size) f32 -> same shape f32 output."""
    b = x_nchw.shape[0]
    d = image_size ** 2
    x_flat = x_nchw.reshape(b, d)               # torch.flatten(x, start_dim=1)

    # Batch tile: 256 rows keeps the MXU M dimension busy; for small batches
    # use the whole batch (block dim == full array dim satisfies (8,128) rule).
    tb = b if b <= batch_tile else batch_tile
    grid = (pl.cdiv(b, tb),)

    io_spec = pl.BlockSpec((tb, d), lambda i: (i, 0))
    # Weights/biases: one full block, constant block index across the grid
    # -> VMEM-resident for the whole kernel (no re-DMA per batch tile).
    param_specs = [pl.BlockSpec(p.shape, lambda i: (0, 0)) for p in params]

    flops = 2 * b * sum(params[i].shape[0] * params[i].shape[1]
                        for i in range(0, 12, 2))
    bytes_accessed = 2 * b * d * 4 + sum(int(p.size) * p.dtype.itemsize
                                         for p in params)
    cost = pl.CostEstimate(flops=flops, transcendentals=b * d,
                           bytes_accessed=bytes_accessed)

    out_flat = pl.pallas_call(
        autoencoder_kernel,
        out_shape=jax.ShapeDtypeStruct((b, d), jnp.float32),
        grid=grid,
        in_specs=[io_spec] + param_specs,
        out_specs=io_spec,
        compiler_params=pltpu.CompilerParams(
            dimension_semantics=("parallel",),          # v7x: 2 TCs share grid
            vmem_limit_bytes=32 * 1024 * 1024),         # safe on v5e/v6e/v7x
        cost_estimate=cost,
    )(x_flat, *params)

    return out_flat.reshape(b, 1, image_size, image_size)


def reference_forward(x_nchw, params, image_size=28):
    """Pure-JAX reference using the same bf16 weights / f32 accumulation."""
    b = x_nchw.shape[0]
    h = x_nchw.reshape(b, image_size ** 2)
    lr = lambda v: jnp.where(v > 0, v, _SLOPE * v)
    for i in range(0, 10, 2):
        w, bia = params[i], params[i + 1]
        h = lr(jnp.dot(h.astype(jnp.bfloat16), w,
                       preferred_element_type=jnp.float32) + bia)
    w, bia = params[10], params[11]
    h = jnp.dot(h.astype(jnp.bfloat16), w,
                preferred_element_type=jnp.float32) + bia
    h = jax.nn.sigmoid(h)
    return h.reshape(b, 1, image_size, image_size)


if __name__ == "__main__":
    image_size = 28
    n_batch = 2

    key = jax.random.PRNGKey(0)
    key_params, key_x, key_x2 = jax.random.split(key, 3)

    params = init_params(key_params, image_size=image_size)

    # Small demo batch (single grid step).
    x = jax.random.normal(key_x, (n_batch, 1, image_size, image_size),
                          dtype=jnp.float32)
    out = jax.block_until_ready(
        basic_autoencoder_forward(x, params, image_size=image_size))
    ref = reference_forward(x, params, image_size=image_size)
    assert out.shape == (n_batch, 1, image_size, image_size)
    # Tolerance covers bf16 matmul rounding + approximate EUP reciprocal.
    assert jnp.allclose(out, ref, atol=1e-2, rtol=0), "mismatch vs reference (B=2)"

    # Larger batch exercises the batch grid (2 tiles of 256, resident weights).
    x2 = jax.random.normal(key_x2, (512, 1, image_size, image_size),
                           dtype=jnp.float32)
    out2 = jax.block_until_ready(
        basic_autoencoder_forward(x2, params, image_size=image_size))
    ref2 = reference_forward(x2, params, image_size=image_size)
    assert jnp.allclose(out2, ref2, atol=1e-2, rtol=0), "mismatch vs reference (B=512)"

    print("KERNEL_OK")
</pallas_src>

<mosaic_0001>
module attributes {stable_mosaic.version = 11 : i64} {
  func.func @autoencoder_kernel(%arg0: i32, %arg1: memref<2x784xf32, #tpu.memory_space<vmem>>, %arg2: memref<784x256xbf16, #tpu.memory_space<vmem>>, %arg3: memref<1x256xf32, #tpu.memory_space<vmem>>, %arg4: memref<256x128xbf16, #tpu.memory_space<vmem>>, %arg5: memref<1x128xf32, #tpu.memory_space<vmem>>, %arg6: memref<128x128xbf16, #tpu.memory_space<vmem>>, %arg7: memref<1x128xf32, #tpu.memory_space<vmem>>, %arg8: memref<128x128xbf16, #tpu.memory_space<vmem>>, %arg9: memref<1x128xf32, #tpu.memory_space<vmem>>, %arg10: memref<128x256xbf16, #tpu.memory_space<vmem>>, %arg11: memref<1x256xf32, #tpu.memory_space<vmem>>, %arg12: memref<256x784xbf16, #tpu.memory_space<vmem>>, %arg13: memref<1x784xf32, #tpu.memory_space<vmem>>, %arg14: memref<2x784xf32, #tpu.memory_space<vmem>>) attributes {dimension_semantics = [#tpu.dimension_semantics<parallel>], iteration_bounds = array<i64: 1>, scalar_prefetch = 0 : i64, scratch_operands = 0 : i64, tpu.core_type = #tpu.core_type<tc>, window_params = [{transform_indices = @transform_0, window_bounds = array<i64: 2, 784>}, {pipeline_mode = #tpu.pipeline_mode<synchronous>, transform_indices = @transform_1, window_bounds = array<i64: 784, 256>}, {pipeline_mode = #tpu.pipeline_mode<synchronous>, transform_indices = @transform_2, window_bounds = array<i64: 1, 256>}, {pipeline_mode = #tpu.pipeline_mode<synchronous>, transform_indices = @transform_3, window_bounds = array<i64: 256, 128>}, {pipeline_mode = #tpu.pipeline_mode<synchronous>, transform_indices = @transform_4, window_bounds = array<i64: 1, 128>}, {pipeline_mode = #tpu.pipeline_mode<synchronous>, transform_indices = @transform_5, window_bounds = array<i64: 128, 128>}, {pipeline_mode = #tpu.pipeline_mode<synchronous>, transform_indices = @transform_6, window_bounds = array<i64: 1, 128>}, {pipeline_mode = #tpu.pipeline_mode<synchronous>, transform_indices = @transform_7, window_bounds = array<i64: 128, 128>}, {pipeline_mode = #tpu.pipeline_mode<synchronous>, transform_indices = @transform_8, window_bounds = array<i64: 1, 128>}, {pipeline_mode = #tpu.pipeline_mode<synchronous>, transform_indices = @transform_9, window_bounds = array<i64: 128, 256>}, {pipeline_mode = #tpu.pipeline_mode<synchronous>, transform_indices = @transform_10, window_bounds = array<i64: 1, 256>}, {pipeline_mode = #tpu.pipeline_mode<synchronous>, transform_indices = @transform_11, window_bounds = array<i64: 256, 784>}, {pipeline_mode = #tpu.pipeline_mode<synchronous>, transform_indices = @transform_12, window_bounds = array<i64: 1, 784>}, {transform_indices = @transform_13, window_bounds = array<i64: 2, 784>}]} {
    %c0 = arith.constant 0 : index
    %c0_0 = arith.constant 0 : index
    %0 = vector.load %arg1[%c0, %c0_0] : memref<2x784xf32, #tpu.memory_space<vmem>>, vector<2x784xf32>
    %1 = arith.truncf %0 : vector<2x784xf32> to vector<2x784xbf16>
    %c0_1 = arith.constant 0 : index
    %c0_2 = arith.constant 0 : index
    %2 = vector.load %arg2[%c0_1, %c0_2] : memref<784x256xbf16, #tpu.memory_space<vmem>>, vector<784x256xbf16>
    %cst = arith.constant dense<0.000000e+00> : vector<2x256xf32>
    %3 = tpu.matmul %1, %2, %cst {dimension_numbers = #tpu.dot_dimension_numbers<[1], [0], [0], [1], [0, 0, 1, 1], [], []>} : vector<2x784xbf16>, vector<784x256xbf16>, vector<2x256xf32> -> vector<2x256xf32>
    %c0_3 = arith.constant 0 : index
    %c0_4 = arith.constant 0 : index
    %4 = vector.load %arg3[%c0_3, %c0_4] : memref<1x256xf32, #tpu.memory_space<vmem>>, vector<1x256xf32>
    %5 = vector.broadcast %4 : vector<1x256xf32> to vector<2x256xf32>
    %6 = arith.addf %3, %5 : vector<2x256xf32>
    %cst_5 = arith.constant 0.000000e+00 : f32
    %7 = vector.broadcast %cst_5 : f32 to vector<2x256xf32>
    %8 = arith.cmpf ogt, %6, %7 : vector<2x256xf32>
    %cst_6 = arith.constant 1.000000e-01 : f32
    %9 = vector.broadcast %cst_6 : f32 to vector<2x256xf32>
    %10 = arith.mulf %9, %6 : vector<2x256xf32>
    %11 = arith.select %8, %6, %10 : vector<2x256xi1>, vector<2x256xf32>
    %12 = arith.truncf %11 : vector<2x256xf32> to vector<2x256xbf16>
    %c0_7 = arith.constant 0 : index
    %c0_8 = arith.constant 0 : index
    %13 = vector.load %arg4[%c0_7, %c0_8] : memref<256x128xbf16, #tpu.memory_space<vmem>>, vector<256x128xbf16>
    %cst_9 = arith.constant dense<0.000000e+00> : vector<2x128xf32>
    %14 = tpu.matmul %12, %13, %cst_9 {dimension_numbers = #tpu.dot_dimension_numbers<[1], [0], [0], [1], [0, 0, 1, 1], [], []>} : vector<2x256xbf16>, vector<256x128xbf16>, vector<2x128xf32> -> vector<2x128xf32>
    %c0_10 = arith.constant 0 : index
    %c0_11 = arith.constant 0 : index
    %15 = vector.load %arg5[%c0_10, %c0_11] : memref<1x128xf32, #tpu.memory_space<vmem>>, vector<1x128xf32>
    %16 = vector.broadcast %15 : vector<1x128xf32> to vector<2x128xf32>
    %17 = arith.addf %14, %16 : vector<2x128xf32>
    %cst_12 = arith.constant 0.000000e+00 : f32
    %18 = vector.broadcast %cst_12 : f32 to vector<2x128xf32>
    %19 = arith.cmpf ogt, %17, %18 : vector<2x128xf32>
    %cst_13 = arith.constant 1.000000e-01 : f32
    %20 = vector.broadcast %cst_13 : f32 to vector<2x128xf32>
    %21 = arith.mulf %20, %17 : vector<2x128xf32>
    %22 = arith.select %19, %17, %21 : vector<2x128xi1>, vector<2x128xf32>
    %23 = arith.truncf %22 : vector<2x128xf32> to vector<2x128xbf16>
    %c0_14 = arith.constant 0 : index
    %c0_15 = arith.constant 0 : index
    %24 = vector.load %arg6[%c0_14, %c0_15] : memref<128x128xbf16, #tpu.memory_space<vmem>>, vector<128x128xbf16>
    %cst_16 = arith.constant dense<0.000000e+00> : vector<2x128xf32>
    %25 = tpu.matmul %23, %24, %cst_16 {dimension_numbers = #tpu.dot_dimension_numbers<[1], [0], [0], [1], [0, 0, 1, 1], [], []>} : vector<2x128xbf16>, vector<128x128xbf16>, vector<2x128xf32> -> vector<2x128xf32>
    %c0_17 = arith.constant 0 : index
    %c0_18 = arith.constant 0 : index
    %26 = vector.load %arg7[%c0_17, %c0_18] : memref<1x128xf32, #tpu.memory_space<vmem>>, vector<1x128xf32>
    %27 = vector.broadcast %26 : vector<1x128xf32> to vector<2x128xf32>
    %28 = arith.addf %25, %27 : vector<2x128xf32>
    %cst_19 = arith.constant 0.000000e+00 : f32
    %29 = vector.broadcast %cst_19 : f32 to vector<2x128xf32>
    %30 = arith.cmpf ogt, %28, %29 : vector<2x128xf32>
    %cst_20 = arith.constant 1.000000e-01 : f32
    %31 = vector.broadcast %cst_20 : f32 to vector<2x128xf32>
    %32 = arith.mulf %31, %28 : vector<2x128xf32>
    %33 = arith.select %30, %28, %32 : vector<2x128xi1>, vector<2x128xf32>
    %34 = arith.truncf %33 : vector<2x128xf32> to vector<2x128xbf16>
    %c0_21 = arith.constant 0 : index
    %c0_22 = arith.constant 0 : index
    %35 = vector.load %arg8[%c0_21, %c0_22] : memref<128x128xbf16, #tpu.memory_space<vmem>>, vector<128x128xbf16>
    %cst_23 = arith.constant dense<0.000000e+00> : vector<2x128xf32>
    %36 = tpu.matmul %34, %35, %cst_23 {dimension_numbers = #tpu.dot_dimension_numbers<[1], [0], [0], [1], [0, 0, 1, 1], [], []>} : vector<2x128xbf16>, vector<128x128xbf16>, vector<2x128xf32> -> vector<2x128xf32>
    %c0_24 = arith.constant 0 : index
    %c0_25 = arith.constant 0 : index
    %37 = vector.load %arg9[%c0_24, %c0_25] : memref<1x128xf32, #tpu.memory_space<vmem>>, vector<1x128xf32>
    %38 = vector.broadcast %37 : vector<1x128xf32> to vector<2x128xf32>
    %39 = arith.addf %36, %38 : vector<2x128xf32>
    %cst_26 = arith.constant 0.000000e+00 : f32
    %40 = vector.broadcast %cst_26 : f32 to vector<2x128xf32>
    %41 = arith.cmpf ogt, %39, %40 : vector<2x128xf32>
    %cst_27 = arith.constant 1.000000e-01 : f32
    %42 = vector.broadcast %cst_27 : f32 to vector<2x128xf32>
    %43 = arith.mulf %42, %39 : vector<2x128xf32>
    %44 = arith.select %41, %39, %43 : vector<2x128xi1>, vector<2x128xf32>
    %45 = arith.truncf %44 : vector<2x128xf32> to vector<2x128xbf16>
    %c0_28 = arith.constant 0 : index
    %c0_29 = arith.constant 0 : index
    %46 = vector.load %arg10[%c0_28, %c0_29] : memref<128x256xbf16, #tpu.memory_space<vmem>>, vector<128x256xbf16>
    %cst_30 = arith.constant dense<0.000000e+00> : vector<2x256xf32>
    %47 = tpu.matmul %45, %46, %cst_30 {dimension_numbers = #tpu.dot_dimension_numbers<[1], [0], [0], [1], [0, 0, 1, 1], [], []>} : vector<2x128xbf16>, vector<128x256xbf16>, vector<2x256xf32> -> vector<2x256xf32>
    %c0_31 = arith.constant 0 : index
    %c0_32 = arith.constant 0 : index
    %48 = vector.load %arg11[%c0_31, %c0_32] : memref<1x256xf32, #tpu.memory_space<vmem>>, vector<1x256xf32>
    %49 = vector.broadcast %48 : vector<1x256xf32> to vector<2x256xf32>
    %50 = arith.addf %47, %49 : vector<2x256xf32>
    %cst_33 = arith.constant 0.000000e+00 : f32
    %51 = vector.broadcast %cst_33 : f32 to vector<2x256xf32>
    %52 = arith.cmpf ogt, %50, %51 : vector<2x256xf32>
    %cst_34 = arith.constant 1.000000e-01 : f32
    %53 = vector.broadcast %cst_34 : f32 to vector<2x256xf32>
    %54 = arith.mulf %53, %50 : vector<2x256xf32>
    %55 = arith.select %52, %50, %54 : vector<2x256xi1>, vector<2x256xf32>
    %56 = arith.truncf %55 : vector<2x256xf32> to vector<2x256xbf16>
    %c0_35 = arith.constant 0 : index
    %c0_36 = arith.constant 0 : index
    %57 = vector.load %arg12[%c0_35, %c0_36] : memref<256x784xbf16, #tpu.memory_space<vmem>>, vector<256x784xbf16>
    %cst_37 = arith.constant dense<0.000000e+00> : vector<2x784xf32>
    %58 = tpu.matmul %56, %57, %cst_37 {dimension_numbers = #tpu.dot_dimension_numbers<[1], [0], [0], [1], [0, 0, 1, 1], [], []>} : vector<2x256xbf16>, vector<256x784xbf16>, vector<2x784xf32> -> vector<2x784xf32>
    %c0_38 = arith.constant 0 : index
    %c0_39 = arith.constant 0 : index
    %59 = vector.load %arg13[%c0_38, %c0_39] : memref<1x784xf32, #tpu.memory_space<vmem>>, vector<1x784xf32>
    %60 = vector.broadcast %59 : vector<1x784xf32> to vector<2x784xf32>
    %61 = arith.addf %58, %60 : vector<2x784xf32>
    %cst_40 = arith.constant 0.000000e+00 : f32
    %62 = vector.broadcast %cst_40 : f32 to vector<2x784xf32>
    %63 = arith.subf %62, %61 : vector<2x784xf32>
    %64 = math.exp %63 : vector<2x784xf32>
    %cst_41 = arith.constant 1.000000e+00 : f32
    %65 = vector.broadcast %cst_41 : f32 to vector<2x784xf32>
    %66 = arith.addf %65, %64 : vector<2x784xf32>
    %67 = tpu.reciprocal %66 {approx = true} : vector<2x784xf32> -> vector<2x784xf32>
    %c0_42 = arith.constant 0 : index
    %c0_43 = arith.constant 0 : index
    %68 = vector.load %arg14[%c0_42, %c0_43] : memref<2x784xf32, #tpu.memory_space<vmem>>, vector<2x784xf32>
    tpu.vector_store %arg14[%c0_42, %c0_43], %67 {strides = array<i32>} : memref<2x784xf32, #tpu.memory_space<vmem>>, vector<2x784xf32>,
    return
  }
  func.func @transform_0(%arg0: i32) -> (i32, i32) {
    %c0_i32 = arith.constant 0 : i32
    %c0_i32_0 = arith.constant 0 : i32
    return %arg0, %c0_i32 : i32, i32
  }
  func.func @transform_1(%arg0: i32) -> (i32, i32) {
    %c0_i32 = arith.constant 0 : i32
    %c0_i32_0 = arith.constant 0 : i32
    %c0_i32_1 = arith.constant 0 : i32
    return %c0_i32, %c0_i32_0 : i32, i32
  }
  func.func @transform_2(%arg0: i32) -> (i32, i32) {
    %c0_i32 = arith.constant 0 : i32
    %c0_i32_0 = arith.constant 0 : i32
    %c0_i32_1 = arith.constant 0 : i32
    return %c0_i32, %c0_i32_0 : i32, i32
  }
  func.func @transform_3(%arg0: i32) -> (i32, i32) {
    %c0_i32 = arith.constant 0 : i32
    %c0_i32_0 = arith.constant 0 : i32
    %c0_i32_1 = arith.constant 0 : i32
    return %c0_i32, %c0_i32_0 : i32, i32
  }
  func.func @transform_4(%arg0: i32) -> (i32, i32) {
    %c0_i32 = arith.constant 0 : i32
    %c0_i32_0 = arith.constant 0 : i32
    %c0_i32_1 = arith.constant 0 : i32
    return %c0_i32, %c0_i32_0 : i32, i32
  }
  func.func @transform_5(%arg0: i32) -> (i32, i32) {
    %c0_i32 = arith.constant 0 : i32
    %c0_i32_0 = arith.constant 0 : i32
    %c0_i32_1 = arith.constant 0 : i32
    return %c0_i32, %c0_i32_0 : i32, i32
  }
  func.func @transform_6(%arg0: i32) -> (i32, i32) {
    %c0_i32 = arith.constant 0 : i32
    %c0_i32_0 = arith.constant 0 : i32
    %c0_i32_1 = arith.constant 0 : i32
    return %c0_i32, %c0_i32_0 : i32, i32
  }
  func.func @transform_7(%arg0: i32) -> (i32, i32) {
    %c0_i32 = arith.constant 0 : i32
    %c0_i32_0 = arith.constant 0 : i32
    %c0_i32_1 = arith.constant 0 : i32
    return %c0_i32, %c0_i32_0 : i32, i32
  }
  func.func @transform_8(%arg0: i32) -> (i32, i32) {
    %c0_i32 = arith.constant 0 : i32
    %c0_i32_0 = arith.constant 0 : i32
    %c0_i32_1 = arith.constant 0 : i32
    return %c0_i32, %c0_i32_0 : i32, i32
  }
  func.func @transform_9(%arg0: i32) -> (i32, i32) {
    %c0_i32 = arith.constant 0 : i32
    %c0_i32_0 = arith.constant 0 : i32
    %c0_i32_1 = arith.constant 0 : i32
    return %c0_i32, %c0_i32_0 : i32, i32
  }
  func.func @transform_10(%arg0: i32) -> (i32, i32) {
    %c0_i32 = arith.constant 0 : i32
    %c0_i32_0 = arith.constant 0 : i32
    %c0_i32_1 = arith.constant 0 : i32
    return %c0_i32, %c0_i32_0 : i32, i32
  }
  func.func @transform_11(%arg0: i32) -> (i32, i32) {
    %c0_i32 = arith.constant 0 : i32
    %c0_i32_0 = arith.constant 0 : i32
    %c0_i32_1 = arith.constant 0 : i32
    return %c0_i32, %c0_i32_0 : i32, i32
  }
  func.func @transform_12(%arg0: i32) -> (i32, i32) {
    %c0_i32 = arith.constant 0 : i32
    %c0_i32_0 = arith.constant 0 : i32
    %c0_i32_1 = arith.constant 0 : i32
    return %c0_i32, %c0_i32_0 : i32, i32
  }
  func.func @transform_13(%arg0: i32) -> (i32, i32) {
    %c0_i32 = arith.constant 0 : i32
    %c0_i32_0 = arith.constant 0 : i32
    return %arg0, %c0_i32 : i32, i32
  }
}

</mosaic_0001>

<llo_original>
// kernel: tpu_custom_call.1
$region0: #{tpu_custom_call.1}
  #allocation0 [shape = 'u32[]', space=smem, size = 0x4, offset = 0x4, fixed_abs, tag = 'smem constant byte address 0x4 - core index']
  #allocation1 [shape = 'u32[144,128]{1,0:T(1,128)}', space=vmem, size = 0x12000, scoped, tag = 'internal scratch']
  %s0 = inlined_call_operand.vmem [shape: f32[2,784], index: 0, kind: input, shape index: {}]
  %s1 = inlined_call_operand.vmem [shape: bf16[784,256], index: 1, kind: input, shape index: {}]
  %s2 = inlined_call_operand.vmem [shape: f32[1,256], index: 2, kind: input, shape index: {}]
  %s3 = inlined_call_operand.vmem [shape: bf16[256,128], index: 3, kind: input, shape index: {}]
  %s4 = inlined_call_operand.vmem [shape: f32[1,128], index: 4, kind: input, shape index: {}]
  %s5 = inlined_call_operand.vmem [shape: bf16[128,128], index: 5, kind: input, shape index: {}]
  %s6 = inlined_call_operand.vmem [shape: f32[1,128], index: 6, kind: input, shape index: {}]
  %s7 = inlined_call_operand.vmem [shape: bf16[128,128], index: 7, kind: input, shape index: {}]
  %s8 = inlined_call_operand.vmem [shape: f32[1,128], index: 8, kind: input, shape index: {}]
  %s9 = inlined_call_operand.vmem [shape: bf16[128,256], index: 9, kind: input, shape index: {}]
  %s10 = inlined_call_operand.vmem [shape: f32[1,256], index: 10, kind: input, shape index: {}]
  %s11 = inlined_call_operand.vmem [shape: bf16[256,784], index: 11, kind: input, shape index: {}]
  %s12 = inlined_call_operand.vmem [shape: f32[1,784], index: 12, kind: input, shape index: {}]
  %s13 = inlined_call_operand.hbm [shape: f32[2,784], index: 13, kind: output, shape index: {}]
  %s14 = sld [smem:[#allocation0]]
  $region62: #{tpu_custom_call.1} parent=0
    _
  %s16 = ssub.s32 1, %s14
  %s17 = scalar_select 0, %s16, %s14
  $region1: #{tpu_custom_call.1} parent=0
    #allocation2 [shape = 'u8[7168]{0}', space=vmem, size = 0x1c00, scoped, tag = 'output window, operand 0, single buffered']
    #allocation3 [shape = 's32[1]{0}', space=sflag, size = 0x4, scoped, tag = 'scoped memory for tpu_custom_call.1']
    %18 = vsyncpa [#allocation3], 0
    // Predicated region
    $region2: #{tpu_custom_call.1} parent=1 // pred_check
      _
    $region3: #{tpu_custom_call.1} parent=1 // pred_check_branch
      %20 = sbr.rel (0) target = $region5
    $region4: #{tpu_custom_call.1} parent=1 // pred_region
      _
    $region5: #{tpu_custom_call.1} parent=1 // pred_fallthru
      _
    // Predicated region
    $region6: #{tpu_custom_call.1} parent=1 // pred_check
      _
    $region7: #{tpu_custom_call.1} parent=1 // pred_check_branch
      %22 = sbr.rel (0) target = $region9
    $region8: #{tpu_custom_call.1} parent=1 // pred_region
      _
    $region9: #{tpu_custom_call.1} parent=1 // pred_fallthru
      _
    // Predicated region
    $region10: #{tpu_custom_call.1} parent=1 // pred_check
      _
    $region11: #{tpu_custom_call.1} parent=1 // pred_check_branch
      %24 = sbr.rel (0) target = $region13
    $region12: #{tpu_custom_call.1} parent=1 // pred_region
      _
    $region13: #{tpu_custom_call.1} parent=1 // pred_fallthru
      _
    // Predicated region
    $region14: #{tpu_custom_call.1} parent=1 // pred_check
      _
    $region15: #{tpu_custom_call.1} parent=1 // pred_check_branch
      %26 = sbr.rel (0) target = $region17
    $region16: #{tpu_custom_call.1} parent=1 // pred_region
      _
    $region17: #{tpu_custom_call.1} parent=1 // pred_fallthru
      _
    // Predicated region
    $region18: #{tpu_custom_call.1} parent=1 // pred_check
      _
    $region19: #{tpu_custom_call.1} parent=1 // pred_check_branch
      %28 = sbr.rel (0) target = $region21
    $region20: #{tpu_custom_call.1} parent=1 // pred_region
      _
    $region21: #{tpu_custom_call.1} parent=1 // pred_fallthru
      _
    // Predicated region
    $region22: #{tpu_custom_call.1} parent=1 // pred_check
      _
    $region23: #{tpu_custom_call.1} parent=1 // pred_check_branch
      %30 = sbr.rel (0) target = $region25
    $region24: #{tpu_custom_call.1} parent=1 // pred_region
      _
    $region25: #{tpu_custom_call.1} parent=1 // pred_fallthru
      _
    // Predicated region
    $region26: #{tpu_custom_call.1} parent=1 // pred_check
      _
    $region27: #{tpu_custom_call.1} parent=1 // pred_check_branch
      %32 = sbr.rel (0) target = $region29
    $region28: #{tpu_custom_call.1} parent=1 // pred_region
      _
    $region29: #{tpu_custom_call.1} parent=1 // pred_fallthru
      _
    // Predicated region
    $region30: #{tpu_custom_call.1} parent=1 // pred_check
      _
    $region31: #{tpu_custom_call.1} parent=1 // pred_check_branch
      %34 = sbr.rel (0) target = $region33
    $region32: #{tpu_custom_call.1} parent=1 // pred_region
      _
    $region33: #{tpu_custom_call.1} parent=1 // pred_fallthru
      _
    // Predicated region
    $region34: #{tpu_custom_call.1} parent=1 // pred_check
      _
    $region35: #{tpu_custom_call.1} parent=1 // pred_check_branch
      %36 = sbr.rel (0) target = $region37
    $region36: #{tpu_custom_call.1} parent=1 // pred_region
      _
    $region37: #{tpu_custom_call.1} parent=1 // pred_fallthru
      _
    // Predicated region
    $region38: #{tpu_custom_call.1} parent=1 // pred_check
      _
    $region39: #{tpu_custom_call.1} parent=1 // pred_check_branch
      %38 = sbr.rel (0) target = $region41
    $region40: #{tpu_custom_call.1} parent=1 // pred_region
      _
    $region41: #{tpu_custom_call.1} parent=1 // pred_fallthru
      _
    // Predicated region
    $region42: #{tpu_custom_call.1} parent=1 // pred_check
      _
    $region43: #{tpu_custom_call.1} parent=1 // pred_check_branch
      %40 = sbr.rel (0) target = $region45
    $region44: #{tpu_custom_call.1} parent=1 // pred_region
      _
    $region45: #{tpu_custom_call.1} parent=1 // pred_fallthru
      _
    // Predicated region
    $region46: #{tpu_custom_call.1} parent=1 // pred_check
      _
    $region47: #{tpu_custom_call.1} parent=1 // pred_check_branch
      %42 = sbr.rel (0) target = $region49
    $region48: #{tpu_custom_call.1} parent=1 // pred_region
      _
    $region49: #{tpu_custom_call.1} parent=1 // pred_fallthru
      _
    // Predicated region
    $region50: #{tpu_custom_call.1} parent=1 // pred_check
      _
    $region51: #{tpu_custom_call.1} parent=1 // pred_check_branch
      %44 = sbr.rel (0) target = $region53
    $region52: #{tpu_custom_call.1} parent=1 // pred_region
      _
    $region53: #{tpu_custom_call.1} parent=1 // pred_fallthru
      _
    %v46 = vld [vmem:[%s0] sm:$0xff]
    %v47 = vld [vmem:[%s0 + $0x8] sm:$0x3f]
    %v50 = vcombine.high %v46, %v46
    %v52 = vunpack.c.l.s4 1983009808
    %v53 = vunpack.c.0.s8 %v52
    %v54 = vlaneseq
    %v55 = vshrl.u32 %v54, 7
    %v56 = vsub.s32 %v53, %v55
    %v57 = vrot.slane %v46, %v56
    %v59 = vunpack.c.l.s4 1983009808
    %v60 = vunpack.c.0.s8 %v59
    %v61 = vlaneseq
    %v62 = vshrl.u32 %v61, 7
    %v63 = vsub.s32 %v60, %v62
    %v64 = vrot.slane %v50, %v63
    %v65 = vcombine.high %v57, %v57
    %v66 = vcombine.high %v64, %v64
    %v67 = vcombine.high %v47, %v47
    %v69 = vunpack.c.l.s4 1983009808
    %v70 = vunpack.c.0.s8 %v69
    %v71 = vlaneseq
    %v72 = vshrl.u32 %v71, 7
    %v73 = vsub.s32 %v70, %v72
    %v74 = vrot.slane %v47, %v73
    %v76 = vunpack.c.l.s4 1983009808
    %v77 = vunpack.c.0.s8 %v76
    %v78 = vlaneseq
    %v79 = vshrl.u32 %v78, 7
    %v80 = vsub.s32 %v77, %v79
    %v81 = vrot.slane %v67, %v80
    %v82 = vcombine.high %v74, %v74
    %v90 = vpack.c.bf16 %v57, %v57
    %v91 = vpack.c.bf16 %v65, %v65
    %v92 = vpack.c.bf16 %v64, %v64
    %v93 = vpack.c.bf16 %v66, %v66
    %v94 = vpack.c.bf16 %v74, %v74
    %v95 = vpack.c.bf16 %v82, %v82
    %v96 = vpack.c.bf16 %v81, %v81
    %v97 = vld [vmem:[%s1] sm:$0xff]
    %v98 = vld [vmem:[%s1 + $0x8] sm:$0xff]
    %v99 = vld [vmem:[%s1 + $0x10] sm:$0xff]
    %v100 = vld [vmem:[%s1 + $0x18] sm:$0xff]
    %v101 = vld [vmem:[%s1 + $0x20] sm:$0xff]
    %v102 = vld [vmem:[%s1 + $0x28] sm:$0xff]
    %v103 = vld [vmem:[%s1 + $0x30] sm:$0xff]
    %v104 = vld [vmem:[%s1 + $0x38] sm:$0xff]
    %v105 = vld [vmem:[%s1 + $0x40] sm:$0xff]
    %v106 = vld [vmem:[%s1 + $0x48] sm:$0xff]
    %v107 = vld [vmem:[%s1 + $0x50] sm:$0xff]
    %v108 = vld [vmem:[%s1 + $0x58] sm:$0xff]
    %v109 = vld [vmem:[%s1 + $0x60] sm:$0xff]
    %v110 = vld [vmem:[%s1 + $0x68] sm:$0xff]
    %v111 = vld [vmem:[%s1 + $0x70] sm:$0xff]
    %v112 = vld [vmem:[%s1 + $0x78] sm:$0xff]
    %v113 = vld [vmem:[%s1 + $0x80] sm:$0xff]
    %v114 = vld [vmem:[%s1 + $0x88] sm:$0xff]
    %v115 = vld [vmem:[%s1 + $0x90] sm:$0xff]
    %v116 = vld [vmem:[%s1 + $0x98] sm:$0xff]
    %v117 = vld [vmem:[%s1 + $0xa0] sm:$0xff]
    %v118 = vld [vmem:[%s1 + $0xa8] sm:$0xff]
    %v119 = vld [vmem:[%s1 + $0xb0] sm:$0xff]
    %v120 = vld [vmem:[%s1 + $0xb8] sm:$0xff]
    %v121 = vld [vmem:[%s1 + $0xc0] sm:$0xff]
    %v122 = vld [vmem:[%s1 + $0xc8] sm:$0xff]
    %v123 = vld [vmem:[%s1 + $0xd0] sm:$0xff]
    %v124 = vld [vmem:[%s1 + $0xd8] sm:$0xff]
    %v125 = vld [vmem:[%s1 + $0xe0] sm:$0xff]
    %v126 = vld [vmem:[%s1 + $0xe8] sm:$0xff]
    %v127 = vld [vmem:[%s1 + $0xf0] sm:$0xff]
    %v128 = vld [vmem:[%s1 + $0xf8] sm:$0xff]
    %v129 = vld [vmem:[%s1 + $0x100] sm:$0xff]
    %v130 = vld [vmem:[%s1 + $0x108] sm:$0xff]
    %v131 = vld [vmem:[%s1 + $0x110] sm:$0xff]
    %v132 = vld [vmem:[%s1 + $0x118] sm:$0xff]
    %v133 = vld [vmem:[%s1 + $0x120] sm:$0xff]
    %v134 = vld [vmem:[%s1 + $0x128] sm:$0xff]
    %v135 = vld [vmem:[%s1 + $0x130] sm:$0xff]
    %v136 = vld [vmem:[%s1 + $0x138] sm:$0xff]
    %v137 = vld [vmem:[%s1 + $0x140] sm:$0xff]
    %v138 = vld [vmem:[%s1 + $0x148] sm:$0xff]
    %v139 = vld [vmem:[%s1 + $0x150] sm:$0xff]
    %v140 = vld [vmem:[%s1 + $0x158] sm:$0xff]
    %v141 = vld [vmem:[%s1 + $0x160] sm:$0xff]
    %v142 = vld [vmem:[%s1 + $0x168] sm:$0xff]
    %v143 = vld [vmem:[%s1 + $0x170] sm:$0xff]
    %v144 = vld [vmem:[%s1 + $0x178] sm:$0xff]
    %v145 = vld [vmem:[%s1 + $0x180] sm:$0xff]
    %v146 = vld [vmem:[%s1 + $0x188] sm:$0xff]
    %v147 = vld [vmem:[%s1 + $0x190] sm:$0xff]
    %v148 = vld [vmem:[%s1 + $0x198] sm:$0xff]
    %v149 = vld [vmem:[%s1 + $0x1a0] sm:$0xff]
    %v150 = vld [vmem:[%s1 + $0x1a8] sm:$0xff]
    %v151 = vld [vmem:[%s1 + $0x1b0] sm:$0xff]
    %v152 = vld [vmem:[%s1 + $0x1b8] sm:$0xff]
    %v153 = vld [vmem:[%s1 + $0x1c0] sm:$0xff]
    %v154 = vld [vmem:[%s1 + $0x1c8] sm:$0xff]
    %v155 = vld [vmem:[%s1 + $0x1d0] sm:$0xff]
    %v156 = vld [vmem:[%s1 + $0x1d8] sm:$0xff]
    %v157 = vld [vmem:[%s1 + $0x1e0] sm:$0xff]
    %v158 = vld [vmem:[%s1 + $0x1e8] sm:$0xff]
    %v159 = vld [vmem:[%s1 + $0x1f0] sm:$0xff]
    %v160 = vld [vmem:[%s1 + $0x1f8] sm:$0xff]
    %v161 = vld [vmem:[%s1 + $0x200] sm:$0xff]
    %v162 = vld [vmem:[%s1 + $0x208] sm:$0xff]
    %v163 = vld [vmem:[%s1 + $0x210] sm:$0xff]
    %v164 = vld [vmem:[%s1 + $0x218] sm:$0xff]
    %v165 = vld [vmem:[%s1 + $0x220] sm:$0xff]
    %v166 = vld [vmem:[%s1 + $0x228] sm:$0xff]
    %v167 = vld [vmem:[%s1 + $0x230] sm:$0xff]
    %v168 = vld [vmem:[%s1 + $0x238] sm:$0xff]
    %v169 = vld [vmem:[%s1 + $0x240] sm:$0xff]
    %v170 = vld [vmem:[%s1 + $0x248] sm:$0xff]
    %v171 = vld [vmem:[%s1 + $0x250] sm:$0xff]
    %v172 = vld [vmem:[%s1 + $0x258] sm:$0xff]
    %v173 = vld [vmem:[%s1 + $0x260] sm:$0xff]
    %v174 = vld [vmem:[%s1 + $0x268] sm:$0xff]
    %v175 = vld [vmem:[%s1 + $0x270] sm:$0xff]
    %v176 = vld [vmem:[%s1 + $0x278] sm:$0xff]
    %v177 = vld [vmem:[%s1 + $0x280] sm:$0xff]
    %v178 = vld [vmem:[%s1 + $0x288] sm:$0xff]
    %v179 = vld [vmem:[%s1 + $0x290] sm:$0xff]
    %v180 = vld [vmem:[%s1 + $0x298] sm:$0xff]
    %v181 = vld [vmem:[%s1 + $0x2a0] sm:$0xff]
    %v182 = vld [vmem:[%s1 + $0x2a8] sm:$0xff]
    %v183 = vld [vmem:[%s1 + $0x2b0] sm:$0xff]
    %v184 = vld [vmem:[%s1 + $0x2b8] sm:$0xff]
    %v185 = vld [vmem:[%s1 + $0x2c0] sm:$0xff]
    %v186 = vld [vmem:[%s1 + $0x2c8] sm:$0xff]
    %v187 = vld [vmem:[%s1 + $0x2d0] sm:$0xff]
    %v188 = vld [vmem:[%s1 + $0x2d8] sm:$0xff]
    %v189 = vld [vmem:[%s1 + $0x2e0] sm:$0xff]
    %v190 = vld [vmem:[%s1 + $0x2e8] sm:$0xff]
    %v191 = vld [vmem:[%s1 + $0x2f0] sm:$0xff]
    %v192 = vld [vmem:[%s1 + $0x2f8] sm:$0xff]
    %v193 = vld [vmem:[%s1 + $0x300] sm:$0xff]
    %v194 = vld [vmem:[%s1 + $0x308] sm:$0xff]
    %v195 = vld [vmem:[%s2] sm:$0x3]
    %v197 = vlaneseq
    %v198 = vshrl.u32 %v197, 7
    %v199 = vsub.s32 0, %v198
    %v200 = vrot.slane %v195, %v199
    %v201 = vlaneseq
    %v202 = vshrl.u32 %v201, 7
    %v203 = vsub.s32 1, %v202
    %v204 = vrot.slane %v195, %v203
    %v305 = vunpack.c.l.b16 %v97
    %v306 = vunpack.c.h.b16 %v97
    %v307 = vunpack.c.l.b16 %v98
    %v308 = vunpack.c.h.b16 %v98
    %v309 = vunpack.c.l.b16 %v99
    %v310 = vunpack.c.h.b16 %v99
    %v311 = vunpack.c.l.b16 %v100
    %v312 = vunpack.c.h.b16 %v100
    %v313 = vunpack.c.l.b16 %v101
    %v314 = vunpack.c.h.b16 %v101
    %v315 = vunpack.c.l.b16 %v102
    %v316 = vunpack.c.h.b16 %v102
    %v317 = vunpack.c.l.b16 %v103
    %v318 = vunpack.c.h.b16 %v103
    %v319 = vunpack.c.l.b16 %v104
    %v320 = vunpack.c.h.b16 %v104
    %v321 = vunpack.c.l.b16 %v105
    %v322 = vunpack.c.h.b16 %v105
    %v323 = vunpack.c.l.b16 %v106
    %v324 = vunpack.c.h.b16 %v106
    %v325 = vunpack.c.l.b16 %v107
    %v326 = vunpack.c.h.b16 %v107
    %v327 = vunpack.c.l.b16 %v108
    %v328 = vunpack.c.h.b16 %v108
    %v329 = vunpack.c.l.b16 %v109
    %v330 = vunpack.c.h.b16 %v109
    %v331 = vunpack.c.l.b16 %v110
    %v332 = vunpack.c.h.b16 %v110
    %v333 = vunpack.c.l.b16 %v111
    %v334 = vunpack.c.h.b16 %v111
    %v335 = vunpack.c.l.b16 %v112
    %v336 = vunpack.c.h.b16 %v112
    %v337 = vunpack.c.l.b16 %v113
    %v338 = vunpack.c.h.b16 %v113
    %v339 = vunpack.c.l.b16 %v114
    %v340 = vunpack.c.h.b16 %v114
    %v341 = vunpack.c.l.b16 %v115
    %v342 = vunpack.c.h.b16 %v115
    %v343 = vunpack.c.l.b16 %v116
    %v344 = vunpack.c.h.b16 %v116
    %v345 = vunpack.c.l.b16 %v117
    %v346 = vunpack.c.h.b16 %v117
    %v347 = vunpack.c.l.b16 %v118
    %v348 = vunpack.c.h.b16 %v118
    %v349 = vunpack.c.l.b16 %v119
    %v350 = vunpack.c.h.b16 %v119
    %v351 = vunpack.c.l.b16 %v120
    %v352 = vunpack.c.h.b16 %v120
    %v353 = vunpack.c.l.b16 %v121
    %v354 = vunpack.c.h.b16 %v121
    %v355 = vunpack.c.l.b16 %v122
    %v356 = vunpack.c.h.b16 %v122
    %v357 = vunpack.c.l.b16 %v123
    %v358 = vunpack.c.h.b16 %v123
    %v359 = vunpack.c.l.b16 %v124
    %v360 = vunpack.c.h.b16 %v124
    %v361 = vunpack.c.l.b16 %v125
    %v362 = vunpack.c.h.b16 %v125
    %v363 = vunpack.c.l.b16 %v126
    %v364 = vunpack.c.h.b16 %v126
    %v365 = vunpack.c.l.b16 %v127
    %v366 = vunpack.c.h.b16 %v127
    %v367 = vunpack.c.l.b16 %v128
    %v368 = vunpack.c.h.b16 %v128
    %v369 = vunpack.c.l.b16 %v129
    %v370 = vunpack.c.h.b16 %v129
    %v371 = vunpack.c.l.b16 %v130
    %v372 = vunpack.c.h.b16 %v130
    %v373 = vunpack.c.l.b16 %v131
    %v374 = vunpack.c.h.b16 %v131
    %v375 = vunpack.c.l.b16 %v132
    %v376 = vunpack.c.h.b16 %v132
    %v377 = vunpack.c.l.b16 %v133
    %v378 = vunpack.c.h.b16 %v133
    %v379 = vunpack.c.l.b16 %v134
    %v380 = vunpack.c.h.b16 %v134
    %v381 = vunpack.c.l.b16 %v135
    %v382 = vunpack.c.h.b16 %v135
    %v383 = vunpack.c.l.b16 %v136
    %v384 = vunpack.c.h.b16 %v136
    %v385 = vunpack.c.l.b16 %v137
    %v386 = vunpack.c.h.b16 %v137
    %v387 = vunpack.c.l.b16 %v138
    %v388 = vunpack.c.h.b16 %v138
    %v389 = vunpack.c.l.b16 %v139
    %v390 = vunpack.c.h.b16 %v139
    %v391 = vunpack.c.l.b16 %v140
    %v392 = vunpack.c.h.b16 %v140
    %v393 = vunpack.c.l.b16 %v141
    %v394 = vunpack.c.h.b16 %v141
    %v395 = vunpack.c.l.b16 %v142
    %v396 = vunpack.c.h.b16 %v142
    %v397 = vunpack.c.l.b16 %v143
    %v398 = vunpack.c.h.b16 %v143
    %v399 = vunpack.c.l.b16 %v144
    %v400 = vunpack.c.h.b16 %v144
    %v401 = vunpack.c.l.b16 %v145
    %v402 = vunpack.c.h.b16 %v145
    %v403 = vunpack.c.l.b16 %v146
    %v404 = vunpack.c.h.b16 %v146
    %v405 = vunpack.c.l.b16 %v147
    %v406 = vunpack.c.h.b16 %v147
    %v407 = vunpack.c.l.b16 %v148
    %v408 = vunpack.c.h.b16 %v148
    %v409 = vunpack.c.l.b16 %v149
    %v410 = vunpack.c.h.b16 %v149
    %v411 = vunpack.c.l.b16 %v150
    %v412 = vunpack.c.h.b16 %v150
    %v413 = vunpack.c.l.b16 %v151
    %v414 = vunpack.c.h.b16 %v151
    %v415 = vunpack.c.l.b16 %v152
    %v416 = vunpack.c.h.b16 %v152
    %v417 = vunpack.c.l.b16 %v153
    %v418 = vunpack.c.h.b16 %v153
    %v419 = vunpack.c.l.b16 %v154
    %v420 = vunpack.c.h.b16 %v154
    %v421 = vunpack.c.l.b16 %v155
    %v422 = vunpack.c.h.b16 %v155
    %v423 = vunpack.c.l.b16 %v156
    %v424 = vunpack.c.h.b16 %v156
    %v425 = vunpack.c.l.b16 %v157
    %v426 = vunpack.c.h.b16 %v157
    %v427 = vunpack.c.l.b16 %v158
    %v428 = vunpack.c.h.b16 %v158
    %v429 = vunpack.c.l.b16 %v159
    %v430 = vunpack.c.h.b16 %v159
    %v431 = vunpack.c.l.b16 %v160
    %v432 = vunpack.c.h.b16 %v160
    %v433 = vunpack.c.l.b16 %v161
    %v434 = vunpack.c.h.b16 %v161
    %v435 = vunpack.c.l.b16 %v162
    %v436 = vunpack.c.h.b16 %v162
    %v437 = vunpack.c.l.b16 %v163
    %v438 = vunpack.c.h.b16 %v163
    %v439 = vunpack.c.l.b16 %v164
    %v440 = vunpack.c.h.b16 %v164
    %v441 = vunpack.c.l.b16 %v165
    %v442 = vunpack.c.h.b16 %v165
    %v443 = vunpack.c.l.b16 %v166
    %v444 = vunpack.c.h.b16 %v166
    %v445 = vunpack.c.l.b16 %v167
    %v446 = vunpack.c.h.b16 %v167
    %v447 = vunpack.c.l.b16 %v168
    %v448 = vunpack.c.h.b16 %v168
    %v449 = vunpack.c.l.b16 %v169
    %v450 = vunpack.c.h.b16 %v169
    %v451 = vunpack.c.l.b16 %v170
    %v452 = vunpack.c.h.b16 %v170
    %v453 = vunpack.c.l.b16 %v171
    %v454 = vunpack.c.h.b16 %v171
    %v455 = vunpack.c.l.b16 %v172
    %v456 = vunpack.c.h.b16 %v172
    %v457 = vunpack.c.l.b16 %v173
    %v458 = vunpack.c.h.b16 %v173
    %v459 = vunpack.c.l.b16 %v174
    %v460 = vunpack.c.h.b16 %v174
    %v461 = vunpack.c.l.b16 %v175
    %v462 = vunpack.c.h.b16 %v175
    %v463 = vunpack.c.l.b16 %v176
    %v464 = vunpack.c.h.b16 %v176
    %v465 = vunpack.c.l.b16 %v177
    %v466 = vunpack.c.h.b16 %v177
    %v467 = vunpack.c.l.b16 %v178
    %v468 = vunpack.c.h.b16 %v178
    %v469 = vunpack.c.l.b16 %v179
    %v470 = vunpack.c.h.b16 %v179
    %v471 = vunpack.c.l.b16 %v180
    %v472 = vunpack.c.h.b16 %v180
    %v473 = vunpack.c.l.b16 %v181
    %v474 = vunpack.c.h.b16 %v181
    %v475 = vunpack.c.l.b16 %v182
    %v476 = vunpack.c.h.b16 %v182
    %v477 = vunpack.c.l.b16 %v183
    %v478 = vunpack.c.h.b16 %v183
    %v479 = vunpack.c.l.b16 %v184
    %v480 = vunpack.c.h.b16 %v184
    %v481 = vunpack.c.l.b16 %v185
    %v482 = vunpack.c.h.b16 %v185
    %v483 = vunpack.c.l.b16 %v186
    %v484 = vunpack.c.h.b16 %v186
    %v485 = vunpack.c.l.b16 %v187
    %v486 = vunpack.c.h.b16 %v187
    %v487 = vunpack.c.l.b16 %v188
    %v488 = vunpack.c.h.b16 %v188
    %v489 = vunpack.c.l.b16 %v189
    %v490 = vunpack.c.h.b16 %v189
    %v491 = vunpack.c.l.b16 %v190
    %v492 = vunpack.c.h.b16 %v190
    %v493 = vunpack.c.l.b16 %v191
    %v494 = vunpack.c.h.b16 %v191
    %v495 = vunpack.c.l.b16 %v192
    %v496 = vunpack.c.h.b16 %v192
    %v497 = vunpack.c.l.b16 %v193
    %v498 = vunpack.c.h.b16 %v193
    %v499 = vunpack.c.l.b16 %v194
    %v500 = vunpack.c.h.b16 %v194
    %v501 = vpack.c.b16 %v307, %v305
    %v502 = vpack.c.b16 %v308, %v306
    %v503 = vpack.c.b16 %v311, %v309
    %v504 = vpack.c.b16 %v312, %v310
    %v505 = vpack.c.b16 %v315, %v313
    %v506 = vpack.c.b16 %v316, %v314
    %v507 = vpack.c.b16 %v319, %v317
    %v508 = vpack.c.b16 %v320, %v318
    %v509 = vpack.c.b16 %v323, %v321
    %v510 = vpack.c.b16 %v324, %v322
    %v511 = vpack.c.b16 %v327, %v325
    %v512 = vpack.c.b16 %v328, %v326
    %v513 = vpack.c.b16 %v331, %v329
    %v514 = vpack.c.b16 %v332, %v330
    %v515 = vpack.c.b16 %v335, %v333
    %v516 = vpack.c.b16 %v336, %v334
    %v517 = vpack.c.b16 %v339, %v337
    %v518 = vpack.c.b16 %v340, %v338
    %v519 = vpack.c.b16 %v343, %v341
    %v520 = vpack.c.b16 %v344, %v342
    %v521 = vpack.c.b16 %v347, %v345
    %v522 = vpack.c.b16 %v348, %v346
    %v523 = vpack.c.b16 %v351, %v349
    %v524 = vpack.c.b16 %v352, %v350
    %v525 = vpack.c.b16 %v355, %v353
    %v526 = vpack.c.b16 %v356, %v354
    %v527 = vpack.c.b16 %v359, %v357
    %v528 = vpack.c.b16 %v360, %v358
    %v529 = vpack.c.b16 %v363, %v361
    %v530 = vpack.c.b16 %v364, %v362
    %v531 = vpack.c.b16 %v367, %v365
    %v532 = vpack.c.b16 %v368, %v366
    %v533 = vpack.c.b16 %v371, %v369
    %v534 = vpack.c.b16 %v372, %v370
    %v535 = vpack.c.b16 %v375, %v373
    %v536 = vpack.c.b16 %v376, %v374
    %v537 = vpack.c.b16 %v379, %v377
    %v538 = vpack.c.b16 %v380, %v378
    %v539 = vpack.c.b16 %v383, %v381
    %v540 = vpack.c.b16 %v384, %v382
    %v541 = vpack.c.b16 %v387, %v385
    %v542 = vpack.c.b16 %v388, %v386
    %v543 = vpack.c.b16 %v391, %v389
    %v544 = vpack.c.b16 %v392, %v390
    %v545 = vpack.c.b16 %v395, %v393
    %v546 = vpack.c.b16 %v396, %v394
    %v547 = vpack.c.b16 %v399, %v397
    %v548 = vpack.c.b16 %v400, %v398
    %v549 = vpack.c.b16 %v403, %v401
    %v550 = vpack.c.b16 %v404, %v402
    %v551 = vpack.c.b16 %v407, %v405
    %v552 = vpack.c.b16 %v408, %v406
    %v553 = vpack.c.b16 %v411, %v409
    %v554 = vpack.c.b16 %v412, %v410
    %v555 = vpack.c.b16 %v415, %v413
    %v556 = vpack.c.b16 %v416, %v414
    %v557 = vpack.c.b16 %v419, %v417
    %v558 = vpack.c.b16 %v420, %v418
    %v559 = vpack.c.b16 %v423, %v421
    %v560 = vpack.c.b16 %v424, %v422
    %v561 = vpack.c.b16 %v427, %v425
    %v562 = vpack.c.b16 %v428, %v426
    %v563 = vpack.c.b16 %v431, %v429
    %v564 = vpack.c.b16 %v432, %v430
    %v565 = vpack.c.b16 %v435, %v433
    %v566 = vpack.c.b16 %v436, %v434
    %v567 = vpack.c.b16 %v439, %v437
    %v568 = vpack.c.b16 %v440, %v438
    %v569 = vpack.c.b16 %v443, %v441
    %v570 = vpack.c.b16 %v444, %v442
    %v571 = vpack.c.b16 %v447, %v445
    %v572 = vpack.c.b16 %v448, %v446
    %v573 = vpack.c.b16 %v451, %v449
    %v574 = vpack.c.b16 %v452, %v450
    %v575 = vpack.c.b16 %v455, %v453
    %v576 = vpack.c.b16 %v456, %v454
    %v577 = vpack.c.b16 %v459, %v457
    %v578 = vpack.c.b16 %v460, %v458
    %v579 = vpack.c.b16 %v463, %v461
    %v580 = vpack.c.b16 %v464, %v462
    %v581 = vpack.c.b16 %v467, %v465
    %v582 = vpack.c.b16 %v468, %v466
    %v583 = vpack.c.b16 %v471, %v469
    %v584 = vpack.c.b16 %v472, %v470
    %v585 = vpack.c.b16 %v475, %v473
    %v586 = vpack.c.b16 %v476, %v474
    %v587 = vpack.c.b16 %v479, %v477
    %v588 = vpack.c.b16 %v480, %v478
    %v589 = vpack.c.b16 %v483, %v481
    %v590 = vpack.c.b16 %v484, %v482
    %v591 = vpack.c.b16 %v487, %v485
    %v592 = vpack.c.b16 %v488, %v486
    %v593 = vpack.c.b16 %v491, %v489
    %v594 = vpack.c.b16 %v492, %v490
    %v595 = vpack.c.b16 %v495, %v493
    %v596 = vpack.c.b16 %v496, %v494
    %v597 = vpack.c.b16 %v499, %v497
    %v598 = vpack.c.b16 %v500, %v498
    %vm697 = vcmask 130048
    %v699 = vsel %vm697, %v96, 0
    %701 = vmatprep.subr.bf16.mxu0 %v502
    %702 = vmatpush1.bf16.msra.mxu0 %v501
    %703 = vmatprep.subr.bf16.mxu0 %v504
    %704 = vmatpush1.bf16.msra.mxu0 %v503
    %705 = vmatprep.subr.bf16.mxu0 %v506
    %706 = vmatpush1.bf16.msra.mxu0 %v505
    %707 = vmatprep.subr.bf16.mxu0 %v508
    %708 = vmatpush1.bf16.msra.mxu0 %v507
    %709 = vmatprep.subr.bf16.mxu0 %v510
    %710 = vmatpush1.bf16.msra.mxu0 %v509
    %711 = vmatprep.subr.bf16.mxu0 %v512
    %712 = vmatpush1.bf16.msra.mxu0 %v511
    %713 = vmatprep.subr.bf16.mxu0 %v514
    %714 = vmatpush1.bf16.msra.mxu0 %v513
    %715 = vmatprep.subr.bf16.mxu0 %v516
    %716 = vmatpush1.bf16.msra.mxu0 %v515
    %717 = vmatprep.subr.bf16.mxu0 %v518
    %718 = vmatpush1.bf16.msra.mxu0 %v517
    %719 = vmatprep.subr.bf16.mxu0 %v520
    %720 = vmatpush1.bf16.msra.mxu0 %v519
    %721 = vmatprep.subr.bf16.mxu0 %v522
    %722 = vmatpush1.bf16.msra.mxu0 %v521
    %723 = vmatprep.subr.bf16.mxu0 %v524
    %724 = vmatpush1.bf16.msra.mxu0 %v523
    %725 = vmatprep.subr.bf16.mxu0 %v526
    %726 = vmatpush1.bf16.msra.mxu0 %v525
    %727 = vmatprep.subr.bf16.mxu0 %v528
    %728 = vmatpush1.bf16.msra.mxu0 %v527
    %729 = vmatprep.subr.bf16.mxu0 %v530
    %730 = vmatpush1.bf16.msra.mxu0 %v529
    %731 = vmatprep.subr.bf16.mxu0 %v532
    %732 = vmatpush1.bf16.msra.mxu0 %v531
    %733 = vmatprep.mubr.bf16.mxu0 %v91
    %734 = vmatmul.mubr.bf16.gmra.mrb[0].mxu0 %v90
    %v735 = vpop.f32.mrb[0].mxu0
    %v736 = vadd.f32 %v200, %v735
    %v737 = vpop.f32.mrb[0].mxu0
    %v738 = vadd.f32 %v204, %v737
    %v739 = vpop.f32.mrb[0].mxu0
    %v740 = vpop.f32.mrb[0].mxu0
    %741 = vdwg.mxu0
    %742 = vmatprep.subr.bf16.mxu0 %v534
    %743 = vmatpush1.bf16.msra.mxu0 %v533
    %744 = vmatprep.subr.bf16.mxu0 %v536
    %745 = vmatpush1.bf16.msra.mxu0 %v535
    %746 = vmatprep.subr.bf16.mxu0 %v538
    %747 = vmatpush1.bf16.msra.mxu0 %v537
    %748 = vmatprep.subr.bf16.mxu0 %v540
    %749 = vmatpush1.bf16.msra.mxu0 %v539
    %750 = vmatprep.subr.bf16.mxu0 %v542
    %751 = vmatpush1.bf16.msra.mxu0 %v541
    %752 = vmatprep.subr.bf16.mxu0 %v544
    %753 = vmatpush1.bf16.msra.mxu0 %v543
    %754 = vmatprep.subr.bf16.mxu0 %v546
    %755 = vmatpush1.bf16.msra.mxu0 %v545
    %756 = vmatprep.subr.bf16.mxu0 %v548
    %757 = vmatpush1.bf16.msra.mxu0 %v547
    %758 = vmatprep.subr.bf16.mxu0 %v550
    %759 = vmatpush1.bf16.msra.mxu0 %v549
    %760 = vmatprep.subr.bf16.mxu0 %v552
    %761 = vmatpush1.bf16.msra.mxu0 %v551
    %762 = vmatprep.subr.bf16.mxu0 %v554
    %763 = vmatpush1.bf16.msra.mxu0 %v553
    %764 = vmatprep.subr.bf16.mxu0 %v556
    %765 = vmatpush1.bf16.msra.mxu0 %v555
    %766 = vmatprep.subr.bf16.mxu0 %v558
    %767 = vmatpush1.bf16.msra.mxu0 %v557
    %768 = vmatprep.subr.bf16.mxu0 %v560
    %769 = vmatpush1.bf16.msra.mxu0 %v559
    %770 = vmatprep.subr.bf16.mxu0 %v562
    %771 = vmatpush1.bf16.msra.mxu0 %v561
    %772 = vmatprep.subr.bf16.mxu0 %v564
    %773 = vmatpush1.bf16.msra.mxu0 %v563
    %774 = vmatprep.mubr.bf16.mxu0 %v93
    %775 = vmatmul.mubr.bf16.gmra.mrb[0].mxu0 %v92
    %v776 = vpop.f32.mrb[0].mxu0
    %v777 = vadd.f32 %v736, %v776
    %v778 = vpop.f32.mrb[0].mxu0
    %v779 = vadd.f32 %v738, %v778
    %v780 = vpop.f32.mrb[0].mxu0
    %v781 = vpop.f32.mrb[0].mxu0
    %782 = vdwg.mxu0
    %783 = vmatprep.subr.bf16.mxu0 %v566
    %784 = vmatpush1.bf16.msra.mxu0 %v565
    %785 = vmatprep.subr.bf16.mxu0 %v568
    %786 = vmatpush1.bf16.msra.mxu0 %v567
    %787 = vmatprep.subr.bf16.mxu0 %v570
    %788 = vmatpush1.bf16.msra.mxu0 %v569
    %789 = vmatprep.subr.bf16.mxu0 %v572
    %790 = vmatpush1.bf16.msra.mxu0 %v571
    %791 = vmatprep.subr.bf16.mxu0 %v574
    %792 = vmatpush1.bf16.msra.mxu0 %v573
    %793 = vmatprep.subr.bf16.mxu0 %v576
    %794 = vmatpush1.bf16.msra.mxu0 %v575
    %795 = vmatprep.subr.bf16.mxu0 %v578
    %796 = vmatpush1.bf16.msra.mxu0 %v577
    %797 = vmatprep.subr.bf16.mxu0 %v580
    %798 = vmatpush1.bf16.msra.mxu0 %v579
    %799 = vmatprep.subr.bf16.mxu0 %v582
    %800 = vmatpush1.bf16.msra.mxu0 %v581
    %801 = vmatprep.subr.bf16.mxu0 %v584
    %802 = vmatpush1.bf16.msra.mxu0 %v583
    %803 = vmatprep.subr.bf16.mxu0 %v586
    %804 = vmatpush1.bf16.msra.mxu0 %v585
    %805 = vmatprep.subr.bf16.mxu0 %v588
    %806 = vmatpush1.bf16.msra.mxu0 %v587
    %807 = vmatprep.subr.bf16.mxu0 %v590
    %808 = vmatpush1.bf16.msra.mxu0 %v589
    %809 = vmatprep.subr.bf16.mxu0 %v592
    %810 = vmatpush1.bf16.msra.mxu0 %v591
    %811 = vmatprep.subr.bf16.mxu0 %v594
    %812 = vmatpush1.bf16.msra.mxu0 %v593
    %813 = vmatprep.subr.bf16.mxu0 %v596
    %814 = vmatpush1.bf16.msra.mxu0 %v595
    %815 = vmatprep.mubr.bf16.mxu0 %v95
    %816 = vmatmul.mubr.bf16.gmra.mrb[0].mxu0 %v94
    %v817 = vpop.f32.mrb[0].mxu0
    %v818 = vadd.f32 %v777, %v817
    %v819 = vpop.f32.mrb[0].mxu0
    %v820 = vadd.f32 %v779, %v819
    %v821 = vpop.f32.mrb[0].mxu0
    %v822 = vpop.f32.mrb[0].mxu0
    %823 = vdwg.mxu0
    %824 = vmatprep.subr.bf16.mxu0 %v598
    %825 = vmatpush1.bf16.msra.mxu0 %v597
    %826 = vmatprep.subr.bf16.mxu0 0
    %827 = vmatpush1.bf16.msra.mxu0 0
    %828 = vmatprep.subr.bf16.mxu0 0
    %829 = vmatpush1.bf16.msra.mxu0 0
    %830 = vmatprep.subr.bf16.mxu0 0
    %831 = vmatpush1.bf16.msra.mxu0 0
    %832 = vmatprep.subr.bf16.mxu0 0
    %833 = vmatpush1.bf16.msra.mxu0 0
    %834 = vmatprep.subr.bf16.mxu0 0
    %835 = vmatpush1.bf16.msra.mxu0 0
    %836 = vmatprep.subr.bf16.mxu0 0
    %837 = vmatpush1.bf16.msra.mxu0 0
    %838 = vmatprep.subr.bf16.mxu0 0
    %839 = vmatpush1.bf16.msra.mxu0 0
    %840 = vmatprep.subr.bf16.mxu0 0
    %841 = vmatpush1.bf16.msra.mxu0 0
    %842 = vmatprep.subr.bf16.mxu0 0
    %843 = vmatpush1.bf16.msra.mxu0 0
    %844 = vmatprep.subr.bf16.mxu0 0
    %845 = vmatpush1.bf16.msra.mxu0 0
    %846 = vmatprep.subr.bf16.mxu0 0
    %847 = vmatpush1.bf16.msra.mxu0 0
    %848 = vmatprep.subr.bf16.mxu0 0
    %849 = vmatpush1.bf16.msra.mxu0 0
    %850 = vmatprep.subr.bf16.mxu0 0
    %851 = vmatpush1.bf16.msra.mxu0 0
    %852 = vmatprep.subr.bf16.mxu0 0
    %853 = vmatpush1.bf16.msra.mxu0 0
    %854 = vmatprep.subr.bf16.mxu0 0
    %855 = vmatpush1.bf16.msra.mxu0 0
    %856 = vmatprep.mubr.bf16.mxu0 0
    %857 = vmatmul.mubr.bf16.gmra.mrb[0].mxu0 %v699
    %v858 = vpop.f32.mrb[0].mxu0
    %v859 = vadd.f32 %v818, %v858
    %v860 = vpop.f32.mrb[0].mxu0
    %v861 = vadd.f32 %v820, %v860
    %v862 = vpop.f32.mrb[0].mxu0
    %v863 = vpop.f32.mrb[0].mxu0
    %864 = vdwg.mxu0
    %vm865 = vcmp.gt.f32.partialorder %v859, 0.0
    %vm866 = vcmp.gt.f32.partialorder %v861, 0.0
    %v867 = vmul.f32 %v859, 0.1
    %v868 = vmul.f32 %v861, 0.1
    %v869 = vsel %vm865, %v859, %v867
    %v870 = vsel %vm866, %v861, %v868
    %v871 = vpack.c.bf16 %v869, %v869
    %v872 = vpack.c.bf16 %v870, %v870
    %v873 = vld [vmem:[%s3] sm:$0xf]
    %v874 = vld [vmem:[%s3 + $0x4] sm:$0xf]
    %v875 = vld [vmem:[%s3 + $0x8] sm:$0xf]
    %v876 = vld [vmem:[%s3 + $0xc] sm:$0xf]
    %v877 = vld [vmem:[%s3 + $0x10] sm:$0xf]
    %v878 = vld [vmem:[%s3 + $0x14] sm:$0xf]
    %v879 = vld [vmem:[%s3 + $0x18] sm:$0xf]
    %v880 = vld [vmem:[%s3 + $0x1c] sm:$0xf]
    %v881 = vld [vmem:[%s3 + $0x20] sm:$0xf]
    %v882 = vld [vmem:[%s3 + $0x24] sm:$0xf]
    %v883 = vld [vmem:[%s3 + $0x28] sm:$0xf]
    %v884 = vld [vmem:[%s3 + $0x2c] sm:$0xf]
    %v885 = vld [vmem:[%s3 + $0x30] sm:$0xf]
    %v886 = vld [vmem:[%s3 + $0x34] sm:$0xf]
    %v887 = vld [vmem:[%s3 + $0x38] sm:$0xf]
    %v888 = vld [vmem:[%s3 + $0x3c] sm:$0xf]
    %v889 = vld [vmem:[%s3 + $0x40] sm:$0xf]
    %v890 = vld [vmem:[%s3 + $0x44] sm:$0xf]
    %v891 = vld [vmem:[%s3 + $0x48] sm:$0xf]
    %v892 = vld [vmem:[%s3 + $0x4c] sm:$0xf]
    %v893 = vld [vmem:[%s3 + $0x50] sm:$0xf]
    %v894 = vld [vmem:[%s3 + $0x54] sm:$0xf]
    %v895 = vld [vmem:[%s3 + $0x58] sm:$0xf]
    %v896 = vld [vmem:[%s3 + $0x5c] sm:$0xf]
    %v897 = vld [vmem:[%s3 + $0x60] sm:$0xf]
    %v898 = vld [vmem:[%s3 + $0x64] sm:$0xf]
    %v899 = vld [vmem:[%s3 + $0x68] sm:$0xf]
    %v900 = vld [vmem:[%s3 + $0x6c] sm:$0xf]
    %v901 = vld [vmem:[%s3 + $0x70] sm:$0xf]
    %v902 = vld [vmem:[%s3 + $0x74] sm:$0xf]
    %v903 = vld [vmem:[%s3 + $0x78] sm:$0xf]
    %v904 = vld [vmem:[%s3 + $0x7c] sm:$0xf]
    %v905 = vld [vmem:[%s4] sm:$0x1]
    %v907 = vlaneseq
    %v908 = vshrl.u32 %v907, 7
    %v909 = vsub.s32 0, %v908
    %v910 = vrot.slane %v905, %v909
    %v944 = vunpack.c.l.b16 %v873
    %v945 = vunpack.c.l.b16 %v874
    %v946 = vunpack.c.l.b16 %v875
    %v947 = vunpack.c.l.b16 %v876
    %v948 = vunpack.c.l.b16 %v877
    %v949 = vunpack.c.l.b16 %v878
    %v950 = vunpack.c.l.b16 %v879
    %v951 = vunpack.c.l.b16 %v880
    %v952 = vunpack.c.l.b16 %v881
    %v953 = vunpack.c.l.b16 %v882
    %v954 = vunpack.c.l.b16 %v883
    %v955 = vunpack.c.l.b16 %v884
    %v956 = vunpack.c.l.b16 %v885
    %v957 = vunpack.c.l.b16 %v886
    %v958 = vunpack.c.l.b16 %v887
    %v959 = vunpack.c.l.b16 %v888
    %v960 = vunpack.c.l.b16 %v889
    %v961 = vunpack.c.l.b16 %v890
    %v962 = vunpack.c.l.b16 %v891
    %v963 = vunpack.c.l.b16 %v892
    %v964 = vunpack.c.l.b16 %v893
    %v965 = vunpack.c.l.b16 %v894
    %v966 = vunpack.c.l.b16 %v895
    %v967 = vunpack.c.l.b16 %v896
    %v968 = vunpack.c.l.b16 %v897
    %v969 = vunpack.c.l.b16 %v898
    %v970 = vunpack.c.l.b16 %v899
    %v971 = vunpack.c.l.b16 %v900
    %v972 = vunpack.c.l.b16 %v901
    %v973 = vunpack.c.l.b16 %v902
    %v974 = vunpack.c.l.b16 %v903
    %v975 = vunpack.c.l.b16 %v904
    %v976 = vpack.c.b16 %v945, %v944
    %v977 = vpack.c.b16 %v947, %v946
    %v978 = vpack.c.b16 %v949, %v948
    %v979 = vpack.c.b16 %v951, %v950
    %v980 = vpack.c.b16 %v953, %v952
    %v981 = vpack.c.b16 %v955, %v954
    %v982 = vpack.c.b16 %v957, %v956
    %v983 = vpack.c.b16 %v959, %v958
    %v984 = vpack.c.b16 %v961, %v960
    %v985 = vpack.c.b16 %v963, %v962
    %v986 = vpack.c.b16 %v965, %v964
    %v987 = vpack.c.b16 %v967, %v966
    %v988 = vpack.c.b16 %v969, %v968
    %v989 = vpack.c.b16 %v971, %v970
    %v990 = vpack.c.b16 %v973, %v972
    %v991 = vpack.c.b16 %v975, %v974
    %1008 = vmatprep.subr.bf16.mxu0 0
    %1009 = vmatpush1.bf16.msra.mxu0 %v976
    %1010 = vmatprep.subr.bf16.mxu0 0
    %1011 = vmatpush1.bf16.msra.mxu0 %v977
    %1012 = vmatprep.subr.bf16.mxu0 0
    %1013 = vmatpush1.bf16.msra.mxu0 %v978
    %1014 = vmatprep.subr.bf16.mxu0 0
    %1015 = vmatpush1.bf16.msra.mxu0 %v979
    %1016 = vmatprep.subr.bf16.mxu0 0
    %1017 = vmatpush1.bf16.msra.mxu0 %v980
    %1018 = vmatprep.subr.bf16.mxu0 0
    %1019 = vmatpush1.bf16.msra.mxu0 %v981
    %1020 = vmatprep.subr.bf16.mxu0 0
    %1021 = vmatpush1.bf16.msra.mxu0 %v982
    %1022 = vmatprep.subr.bf16.mxu0 0
    %1023 = vmatpush1.bf16.msra.mxu0 %v983
    %1024 = vmatprep.subr.bf16.mxu0 0
    %1025 = vmatpush1.bf16.msra.mxu0 %v984
    %1026 = vmatprep.subr.bf16.mxu0 0
    %1027 = vmatpush1.bf16.msra.mxu0 %v985
    %1028 = vmatprep.subr.bf16.mxu0 0
    %1029 = vmatpush1.bf16.msra.mxu0 %v986
    %1030 = vmatprep.subr.bf16.mxu0 0
    %1031 = vmatpush1.bf16.msra.mxu0 %v987
    %1032 = vmatprep.subr.bf16.mxu0 0
    %1033 = vmatpush1.bf16.msra.mxu0 %v988
    %1034 = vmatprep.subr.bf16.mxu0 0
    %1035 = vmatpush1.bf16.msra.mxu0 %v989
    %1036 = vmatprep.subr.bf16.mxu0 0
    %1037 = vmatpush1.bf16.msra.mxu0 %v990
    %1038 = vmatprep.subr.bf16.mxu0 0
    %1039 = vmatpush1.bf16.msra.mxu0 %v991
    %1040 = vmatprep.mubr.bf16.mxu0 %v872
    %1041 = vmatmul.mubr.bf16.gmra.mrb[0].mxu0 %v871
    %v1042 = vpop.f32.mrb[0].mxu0
    %v1043 = vadd.f32 %v910, %v1042
    %v1044 = vpop.f32.mrb[0].mxu0
    %v1045 = vpop.f32.mrb[0].mxu0
    %v1046 = vpop.f32.mrb[0].mxu0
    %1047 = vdwg.mxu0
    %vm1048 = vcmp.gt.f32.partialorder %v1043, 0.0
    %v1049 = vmul.f32 %v1043, 0.1
    %v1050 = vsel %vm1048, %v1043, %v1049
    %v1051 = vpack.c.bf16 %v1050, %v1050
    %v1052 = vld [vmem:[%s5] sm:$0xf]
    %v1053 = vld [vmem:[%s5 + $0x4] sm:$0xf]
    %v1054 = vld [vmem:[%s5 + $0x8] sm:$0xf]
    %v1055 = vld [vmem:[%s5 + $0xc] sm:$0xf]
    %v1056 = vld [vmem:[%s5 + $0x10] sm:$0xf]
    %v1057 = vld [vmem:[%s5 + $0x14] sm:$0xf]
    %v1058 = vld [vmem:[%s5 + $0x18] sm:$0xf]
    %v1059 = vld [vmem:[%s5 + $0x1c] sm:$0xf]
    %v1060 = vld [vmem:[%s5 + $0x20] sm:$0xf]
    %v1061 = vld [vmem:[%s5 + $0x24] sm:$0xf]
    %v1062 = vld [vmem:[%s5 + $0x28] sm:$0xf]
    %v1063 = vld [vmem:[%s5 + $0x2c] sm:$0xf]
    %v1064 = vld [vmem:[%s5 + $0x30] sm:$0xf]
    %v1065 = vld [vmem:[%s5 + $0x34] sm:$0xf]
    %v1066 = vld [vmem:[%s5 + $0x38] sm:$0xf]
    %v1067 = vld [vmem:[%s5 + $0x3c] sm:$0xf]
    %v1068 = vld [vmem:[%s6] sm:$0x1]
    %v1070 = vlaneseq
    %v1071 = vshrl.u32 %v1070, 7
    %v1072 = vsub.s32 0, %v1071
    %v1073 = vrot.slane %v1068, %v1072
    %v1091 = vunpack.c.l.b16 %v1052
    %v1092 = vunpack.c.l.b16 %v1053
    %v1093 = vunpack.c.l.b16 %v1054
    %v1094 = vunpack.c.l.b16 %v1055
    %v1095 = vunpack.c.l.b16 %v1056
    %v1096 = vunpack.c.l.b16 %v1057
    %v1097 = vunpack.c.l.b16 %v1058
    %v1098 = vunpack.c.l.b16 %v1059
    %v1099 = vunpack.c.l.b16 %v1060
    %v1100 = vunpack.c.l.b16 %v1061
    %v1101 = vunpack.c.l.b16 %v1062
    %v1102 = vunpack.c.l.b16 %v1063
    %v1103 = vunpack.c.l.b16 %v1064
    %v1104 = vunpack.c.l.b16 %v1065
    %v1105 = vunpack.c.l.b16 %v1066
    %v1106 = vunpack.c.l.b16 %v1067
    %v1107 = vpack.c.b16 %v1092, %v1091
    %v1108 = vpack.c.b16 %v1094, %v1093
    %v1109 = vpack.c.b16 %v1096, %v1095
    %v1110 = vpack.c.b16 %v1098, %v1097
    %v1111 = vpack.c.b16 %v1100, %v1099
    %v1112 = vpack.c.b16 %v1102, %v1101
    %v1113 = vpack.c.b16 %v1104, %v1103
    %v1114 = vpack.c.b16 %v1106, %v1105
    %1123 = vmatprep.subr.bf16.mxu0 0
    %1124 = vmatpush1.bf16.msra.mxu0 %v1107
    %1125 = vmatprep.subr.bf16.mxu0 0
    %1126 = vmatpush1.bf16.msra.mxu0 %v1108
    %1127 = vmatprep.subr.bf16.mxu0 0
    %1128 = vmatpush1.bf16.msra.mxu0 %v1109
    %1129 = vmatprep.subr.bf16.mxu0 0
    %1130 = vmatpush1.bf16.msra.mxu0 %v1110
    %1131 = vmatprep.subr.bf16.mxu0 0
    %1132 = vmatpush1.bf16.msra.mxu0 %v1111
    %1133 = vmatprep.subr.bf16.mxu0 0
    %1134 = vmatpush1.bf16.msra.mxu0 %v1112
    %1135 = vmatprep.subr.bf16.mxu0 0
    %1136 = vmatpush1.bf16.msra.mxu0 %v1113
    %1137 = vmatprep.subr.bf16.mxu0 0
    %1138 = vmatpush1.bf16.msra.mxu0 %v1114
    %1139 = vmatprep.subr.bf16.mxu0 0
    %1140 = vmatpush1.bf16.msra.mxu0 0
    %1141 = vmatprep.subr.bf16.mxu0 0
    %1142 = vmatpush1.bf16.msra.mxu0 0
    %1143 = vmatprep.subr.bf16.mxu0 0
    %1144 = vmatpush1.bf16.msra.mxu0 0
    %1145 = vmatprep.subr.bf16.mxu0 0
    %1146 = vmatpush1.bf16.msra.mxu0 0
    %1147 = vmatprep.subr.bf16.mxu0 0
    %1148 = vmatpush1.bf16.msra.mxu0 0
    %1149 = vmatprep.subr.bf16.mxu0 0
    %1150 = vmatpush1.bf16.msra.mxu0 0
    %1151 = vmatprep.subr.bf16.mxu0 0
    %1152 = vmatpush1.bf16.msra.mxu0 0
    %1153 = vmatprep.subr.bf16.mxu0 0
    %1154 = vmatpush1.bf16.msra.mxu0 0
    %1155 = vmatprep.mubr.bf16.mxu0 0
    %1156 = vmatmul.mubr.bf16.gmra.mrb[0].mxu0 %v1051
    %v1157 = vpop.f32.mrb[0].mxu0
    %v1158 = vadd.f32 %v1073, %v1157
    %v1159 = vpop.f32.mrb[0].mxu0
    %v1160 = vpop.f32.mrb[0].mxu0
    %v1161 = vpop.f32.mrb[0].mxu0
    %1162 = vdwg.mxu0
    %vm1163 = vcmp.gt.f32.partialorder %v1158, 0.0
    %v1164 = vmul.f32 %v1158, 0.1
    %v1165 = vsel %vm1163, %v1158, %v1164
    %v1166 = vpack.c.bf16 %v1165, %v1165
    %v1167 = vld [vmem:[%s7] sm:$0xf]
    %v1168 = vld [vmem:[%s7 + $0x4] sm:$0xf]
    %v1169 = vld [vmem:[%s7 + $0x8] sm:$0xf]
    %v1170 = vld [vmem:[%s7 + $0xc] sm:$0xf]
    %v1171 = vld [vmem:[%s7 + $0x10] sm:$0xf]
    %v1172 = vld [vmem:[%s7 + $0x14] sm:$0xf]
    %v1173 = vld [vmem:[%s7 + $0x18] sm:$0xf]
    %v1174 = vld [vmem:[%s7 + $0x1c] sm:$0xf]
    %v1175 = vld [vmem:[%s7 + $0x20] sm:$0xf]
    %v1176 = vld [vmem:[%s7 + $0x24] sm:$0xf]
    %v1177 = vld [vmem:[%s7 + $0x28] sm:$0xf]
    %v1178 = vld [vmem:[%s7 + $0x2c] sm:$0xf]
    %v1179 = vld [vmem:[%s7 + $0x30] sm:$0xf]
    %v1180 = vld [vmem:[%s7 + $0x34] sm:$0xf]
    %v1181 = vld [vmem:[%s7 + $0x38] sm:$0xf]
    %v1182 = vld [vmem:[%s7 + $0x3c] sm:$0xf]
    %v1183 = vld [vmem:[%s8] sm:$0x1]
    %v1185 = vlaneseq
    %v1186 = vshrl.u32 %v1185, 7
    %v1187 = vsub.s32 0, %v1186
    %v1188 = vrot.slane %v1183, %v1187
    %v1206 = vunpack.c.l.b16 %v1167
    %v1207 = vunpack.c.l.b16 %v1168
    %v1208 = vunpack.c.l.b16 %v1169
    %v1209 = vunpack.c.l.b16 %v1170
    %v1210 = vunpack.c.l.b16 %v1171
    %v1211 = vunpack.c.l.b16 %v1172
    %v1212 = vunpack.c.l.b16 %v1173
    %v1213 = vunpack.c.l.b16 %v1174
    %v1214 = vunpack.c.l.b16 %v1175
    %v1215 = vunpack.c.l.b16 %v1176
    %v1216 = vunpack.c.l.b16 %v1177
    %v1217 = vunpack.c.l.b16 %v1178
    %v1218 = vunpack.c.l.b16 %v1179
    %v1219 = vunpack.c.l.b16 %v1180
    %v1220 = vunpack.c.l.b16 %v1181
    %v1221 = vunpack.c.l.b16 %v1182
    %v1222 = vpack.c.b16 %v1207, %v1206
    %v1223 = vpack.c.b16 %v1209, %v1208
    %v1224 = vpack.c.b16 %v1211, %v1210
    %v1225 = vpack.c.b16 %v1213, %v1212
    %v1226 = vpack.c.b16 %v1215, %v1214
    %v1227 = vpack.c.b16 %v1217, %v1216
    %v1228 = vpack.c.b16 %v1219, %v1218
    %v1229 = vpack.c.b16 %v1221, %v1220
    %1238 = vmatprep.subr.bf16.mxu0 0
    %1239 = vmatpush1.bf16.msra.mxu0 %v1222
    %1240 = vmatprep.subr.bf16.mxu0 0
    %1241 = vmatpush1.bf16.msra.mxu0 %v1223
    %1242 = vmatprep.subr.bf16.mxu0 0
    %1243 = vmatpush1.bf16.msra.mxu0 %v1224
    %1244 = vmatprep.subr.bf16.mxu0 0
    %1245 = vmatpush1.bf16.msra.mxu0 %v1225
    %1246 = vmatprep.subr.bf16.mxu0 0
    %1247 = vmatpush1.bf16.msra.mxu0 %v1226
    %1248 = vmatprep.subr.bf16.mxu0 0
    %1249 = vmatpush1.bf16.msra.mxu0 %v1227
    %1250 = vmatprep.subr.bf16.mxu0 0
    %1251 = vmatpush1.bf16.msra.mxu0 %v1228
    %1252 = vmatprep.subr.bf16.mxu0 0
    %1253 = vmatpush1.bf16.msra.mxu0 %v1229
    %1254 = vmatprep.subr.bf16.mxu0 0
    %1255 = vmatpush1.bf16.msra.mxu0 0
    %1256 = vmatprep.subr.bf16.mxu0 0
    %1257 = vmatpush1.bf16.msra.mxu0 0
    %1258 = vmatprep.subr.bf16.mxu0 0
    %1259 = vmatpush1.bf16.msra.mxu0 0
    %1260 = vmatprep.subr.bf16.mxu0 0
    %1261 = vmatpush1.bf16.msra.mxu0 0
    %1262 = vmatprep.subr.bf16.mxu0 0
    %1263 = vmatpush1.bf16.msra.mxu0 0
    %1264 = vmatprep.subr.bf16.mxu0 0
    %1265 = vmatpush1.bf16.msra.mxu0 0
    %1266 = vmatprep.subr.bf16.mxu0 0
    %1267 = vmatpush1.bf16.msra.mxu0 0
    %1268 = vmatprep.subr.bf16.mxu0 0
    %1269 = vmatpush1.bf16.msra.mxu0 0
    %1270 = vmatprep.mubr.bf16.mxu0 0
    %1271 = vmatmul.mubr.bf16.gmra.mrb[0].mxu0 %v1166
    %v1272 = vpop.f32.mrb[0].mxu0
    %v1273 = vadd.f32 %v1188, %v1272
    %v1274 = vpop.f32.mrb[0].mxu0
    %v1275 = vpop.f32.mrb[0].mxu0
    %v1276 = vpop.f32.mrb[0].mxu0
    %1277 = vdwg.mxu0
    %vm1278 = vcmp.gt.f32.partialorder %v1273, 0.0
    %v1279 = vmul.f32 %v1273, 0.1
    %v1280 = vsel %vm1278, %v1273, %v1279
    %v1281 = vpack.c.bf16 %v1280, %v1280
    %v1282 = vld [vmem:[%s9] sm:$0xff]
    %v1283 = vld [vmem:[%s9 + $0x8] sm:$0xff]
    %v1284 = vld [vmem:[%s9 + $0x10] sm:$0xff]
    %v1285 = vld [vmem:[%s9 + $0x18] sm:$0xff]
    %v1286 = vld [vmem:[%s9 + $0x20] sm:$0xff]
    %v1287 = vld [vmem:[%s9 + $0x28] sm:$0xff]
    %v1288 = vld [vmem:[%s9 + $0x30] sm:$0xff]
    %v1289 = vld [vmem:[%s9 + $0x38] sm:$0xff]
    %v1290 = vld [vmem:[%s9 + $0x40] sm:$0xff]
    %v1291 = vld [vmem:[%s9 + $0x48] sm:$0xff]
    %v1292 = vld [vmem:[%s9 + $0x50] sm:$0xff]
    %v1293 = vld [vmem:[%s9 + $0x58] sm:$0xff]
    %v1294 = vld [vmem:[%s9 + $0x60] sm:$0xff]
    %v1295 = vld [vmem:[%s9 + $0x68] sm:$0xff]
    %v1296 = vld [vmem:[%s9 + $0x70] sm:$0xff]
    %v1297 = vld [vmem:[%s9 + $0x78] sm:$0xff]
    %v1298 = vld [vmem:[%s10] sm:$0x3]
    %v1300 = vlaneseq
    %v1301 = vshrl.u32 %v1300, 7
    %v1302 = vsub.s32 0, %v1301
    %v1303 = vrot.slane %v1298, %v1302
    %v1304 = vlaneseq
    %v1305 = vshrl.u32 %v1304, 7
    %v1306 = vsub.s32 1, %v1305
    %v1307 = vrot.slane %v1298, %v1306
    %v1326 = vunpack.c.l.b16 %v1282
    %v1327 = vunpack.c.h.b16 %v1282
    %v1328 = vunpack.c.l.b16 %v1283
    %v1329 = vunpack.c.h.b16 %v1283
    %v1330 = vunpack.c.l.b16 %v1284
    %v1331 = vunpack.c.h.b16 %v1284
    %v1332 = vunpack.c.l.b16 %v1285
    %v1333 = vunpack.c.h.b16 %v1285
    %v1334 = vunpack.c.l.b16 %v1286
    %v1335 = vunpack.c.h.b16 %v1286
    %v1336 = vunpack.c.l.b16 %v1287
    %v1337 = vunpack.c.h.b16 %v1287
    %v1338 = vunpack.c.l.b16 %v1288
    %v1339 = vunpack.c.h.b16 %v1288
    %v1340 = vunpack.c.l.b16 %v1289
    %v1341 = vunpack.c.h.b16 %v1289
    %v1342 = vunpack.c.l.b16 %v1290
    %v1343 = vunpack.c.h.b16 %v1290
    %v1344 = vunpack.c.l.b16 %v1291
    %v1345 = vunpack.c.h.b16 %v1291
    %v1346 = vunpack.c.l.b16 %v1292
    %v1347 = vunpack.c.h.b16 %v1292
    %v1348 = vunpack.c.l.b16 %v1293
    %v1349 = vunpack.c.h.b16 %v1293
    %v1350 = vunpack.c.l.b16 %v1294
    %v1351 = vunpack.c.h.b16 %v1294
    %v1352 = vunpack.c.l.b16 %v1295
    %v1353 = vunpack.c.h.b16 %v1295
    %v1354 = vunpack.c.l.b16 %v1296
    %v1355 = vunpack.c.h.b16 %v1296
    %v1356 = vunpack.c.l.b16 %v1297
    %v1357 = vunpack.c.h.b16 %v1297
    %v1358 = vpack.c.b16 %v1328, %v1326
    %v1359 = vpack.c.b16 %v1329, %v1327
    %v1360 = vpack.c.b16 %v1332, %v1330
    %v1361 = vpack.c.b16 %v1333, %v1331
    %v1362 = vpack.c.b16 %v1336, %v1334
    %v1363 = vpack.c.b16 %v1337, %v1335
    %v1364 = vpack.c.b16 %v1340, %v1338
    %v1365 = vpack.c.b16 %v1341, %v1339
    %v1366 = vpack.c.b16 %v1344, %v1342
    %v1367 = vpack.c.b16 %v1345, %v1343
    %v1368 = vpack.c.b16 %v1348, %v1346
    %v1369 = vpack.c.b16 %v1349, %v1347
    %v1370 = vpack.c.b16 %v1352, %v1350
    %v1371 = vpack.c.b16 %v1353, %v1351
    %v1372 = vpack.c.b16 %v1356, %v1354
    %v1373 = vpack.c.b16 %v1357, %v1355
    %1390 = vmatprep.subr.bf16.mxu0 %v1359
    %1391 = vmatpush1.bf16.msra.mxu0 %v1358
    %1392 = vmatprep.subr.bf16.mxu0 %v1361
    %1393 = vmatpush1.bf16.msra.mxu0 %v1360
    %1394 = vmatprep.subr.bf16.mxu0 %v1363
    %1395 = vmatpush1.bf16.msra.mxu0 %v1362
    %1396 = vmatprep.subr.bf16.mxu0 %v1365
    %1397 = vmatpush1.bf16.msra.mxu0 %v1364
    %1398 = vmatprep.subr.bf16.mxu0 %v1367
    %1399 = vmatpush1.bf16.msra.mxu0 %v1366
    %1400 = vmatprep.subr.bf16.mxu0 %v1369
    %1401 = vmatpush1.bf16.msra.mxu0 %v1368
    %1402 = vmatprep.subr.bf16.mxu0 %v1371
    %1403 = vmatpush1.bf16.msra.mxu0 %v1370
    %1404 = vmatprep.subr.bf16.mxu0 %v1373
    %1405 = vmatpush1.bf16.msra.mxu0 %v1372
    %1406 = vmatprep.subr.bf16.mxu0 0
    %1407 = vmatpush1.bf16.msra.mxu0 0
    %1408 = vmatprep.subr.bf16.mxu0 0
    %1409 = vmatpush1.bf16.msra.mxu0 0
    %1410 = vmatprep.subr.bf16.mxu0 0
    %1411 = vmatpush1.bf16.msra.mxu0 0
    %1412 = vmatprep.subr.bf16.mxu0 0
    %1413 = vmatpush1.bf16.msra.mxu0 0
    %1414 = vmatprep.subr.bf16.mxu0 0
    %1415 = vmatpush1.bf16.msra.mxu0 0
    %1416 = vmatprep.subr.bf16.mxu0 0
    %1417 = vmatpush1.bf16.msra.mxu0 0
    %1418 = vmatprep.subr.bf16.mxu0 0
    %1419 = vmatpush1.bf16.msra.mxu0 0
    %1420 = vmatprep.subr.bf16.mxu0 0
    %1421 = vmatpush1.bf16.msra.mxu0 0
    %1422 = vmatprep.mubr.bf16.mxu0 0
    %1423 = vmatmul.mubr.bf16.gmra.mrb[0].mxu0 %v1281
    %v1424 = vpop.f32.mrb[0].mxu0
    %v1425 = vadd.f32 %v1303, %v1424
    %v1426 = vpop.f32.mrb[0].mxu0
    %v1427 = vadd.f32 %v1307, %v1426
    %v1428 = vpop.f32.mrb[0].mxu0
    %v1429 = vpop.f32.mrb[0].mxu0
    %1430 = vdwg.mxu0
    %vm1431 = vcmp.gt.f32.partialorder %v1425, 0.0
    %vm1432 = vcmp.gt.f32.partialorder %v1427, 0.0
    %v1433 = vmul.f32 %v1425, 0.1
    %v1434 = vmul.f32 %v1427, 0.1
    %v1435 = vsel %vm1431, %v1425, %v1433
    %v1436 = vsel %vm1432, %v1427, %v1434
    %v1437 = vpack.c.bf16 %v1435, %v1435
    %v1438 = vpack.c.bf16 %v1436, %v1436
    %v1439 = vld [vmem:[%s11] sm:$0xff]
    %v1440 = vld [vmem:[%s11 + $0x8] sm:$0xff]
    %v1441 = vld [vmem:[%s11 + $0x10] sm:$0xff]
    %v1442 = vld [vmem:[%s11 + $0x18] sm:$0xf]
    %v1443 = vld [vmem:[%s11 + $0x1c] sm:$0xff]
    %v1444 = vld [vmem:[%s11 + $0x24] sm:$0xff]
    %v1445 = vld [vmem:[%s11 + $0x2c] sm:$0xff]
    %v1446 = vld [vmem:[%s11 + $0x34] sm:$0xf]
    %v1447 = vld [vmem:[%s11 + $0x38] sm:$0xff]
    %v1448 = vld [vmem:[%s11 + $0x40] sm:$0xff]
    %v1449 = vld [vmem:[%s11 + $0x48] sm:$0xff]
    %v1450 = vld [vmem:[%s11 + $0x50] sm:$0xf]
    %v1451 = vld [vmem:[%s11 + $0x54] sm:$0xff]
    %v1452 = vld [vmem:[%s11 + $0x5c] sm:$0xff]
    %v1453 = vld [vmem:[%s11 + $0x64] sm:$0xff]
    %v1454 = vld [vmem:[%s11 + $0x6c] sm:$0xf]
    %v1455 = vld [vmem:[%s11 + $0x70] sm:$0xff]
    %v1456 = vld [vmem:[%s11 + $0x78] sm:$0xff]
    %v1457 = vld [vmem:[%s11 + $0x80] sm:$0xff]
    %v1458 = vld [vmem:[%s11 + $0x88] sm:$0xf]
    %v1459 = vld [vmem:[%s11 + $0x8c] sm:$0xff]
    %v1460 = vld [vmem:[%s11 + $0x94] sm:$0xff]
    %v1461 = vld [vmem:[%s11 + $0x9c] sm:$0xff]
    %v1462 = vld [vmem:[%s11 + $0xa4] sm:$0xf]
    %v1463 = vld [vmem:[%s11 + $0xa8] sm:$0xff]
    %v1464 = vld [vmem:[%s11 + $0xb0] sm:$0xff]
    %v1465 = vld [vmem:[%s11 + $0xb8] sm:$0xff]
    %v1466 = vld [vmem:[%s11 + $0xc0] sm:$0xf]
    %v1467 = vld [vmem:[%s11 + $0xc4] sm:$0xff]
    %v1468 = vld [vmem:[%s11 + $0xcc] sm:$0xff]
    %v1469 = vld [vmem:[%s11 + $0xd4] sm:$0xff]
    %v1470 = vld [vmem:[%s11 + $0xdc] sm:$0xf]
    %v1471 = vld [vmem:[%s11 + $0xe0] sm:$0xff]
    %v1472 = vld [vmem:[%s11 + $0xe8] sm:$0xff]
    %v1473 = vld [vmem:[%s11 + $0xf0] sm:$0xff]
    %v1474 = vld [vmem:[%s11 + $0xf8] sm:$0xf]
    %v1475 = vld [vmem:[%s11 + $0xfc] sm:$0xff]
    %v1476 = vld [vmem:[%s11 + $0x104] sm:$0xff]
    %v1477 = vld [vmem:[%s11 + $0x10c] sm:$0xff]
    %v1478 = vld [vmem:[%s11 + $0x114] sm:$0xf]
    %v1479 = vld [vmem:[%s11 + $0x118] sm:$0xff]
    %v1480 = vld [vmem:[%s11 + $0x120] sm:$0xff]
    %v1481 = vld [vmem:[%s11 + $0x128] sm:$0xff]
    %v1482 = vld [vmem:[%s11 + $0x130] sm:$0xf]
    %v1483 = vld [vmem:[%s11 + $0x134] sm:$0xff]
    %v1484 = vld [vmem:[%s11 + $0x13c] sm:$0xff]
    %v1485 = vld [vmem:[%s11 + $0x144] sm:$0xff]
    %v1486 = vld [vmem:[%s11 + $0x14c] sm:$0xf]
    %v1487 = vld [vmem:[%s11 + $0x150] sm:$0xff]
    %v1488 = vld [vmem:[%s11 + $0x158] sm:$0xff]
    %v1489 = vld [vmem:[%s11 + $0x160] sm:$0xff]
    %v1490 = vld [vmem:[%s11 + $0x168] sm:$0xf]
    %v1491 = vld [vmem:[%s11 + $0x16c] sm:$0xff]
    %v1492 = vld [vmem:[%s11 + $0x174] sm:$0xff]
    %v1493 = vld [vmem:[%s11 + $0x17c] sm:$0xff]
    %v1494 = vld [vmem:[%s11 + $0x184] sm:$0xf]
    %v1495 = vld [vmem:[%s11 + $0x188] sm:$0xff]
    %v1496 = vld [vmem:[%s11 + $0x190] sm:$0xff]
    %v1497 = vld [vmem:[%s11 + $0x198] sm:$0xff]
    %v1498 = vld [vmem:[%s11 + $0x1a0] sm:$0xf]
    %v1499 = vld [vmem:[%s11 + $0x1a4] sm:$0xff]
    %v1500 = vld [vmem:[%s11 + $0x1ac] sm:$0xff]
    %v1501 = vld [vmem:[%s11 + $0x1b4] sm:$0xff]
    %v1502 = vld [vmem:[%s11 + $0x1bc] sm:$0xf]
    %v1503 = vld [vmem:[%s11 + $0x1c0] sm:$0xff]
    %v1504 = vld [vmem:[%s11 + $0x1c8] sm:$0xff]
    %v1505 = vld [vmem:[%s11 + $0x1d0] sm:$0xff]
    %v1506 = vld [vmem:[%s11 + $0x1d8] sm:$0xf]
    %v1507 = vld [vmem:[%s11 + $0x1dc] sm:$0xff]
    %v1508 = vld [vmem:[%s11 + $0x1e4] sm:$0xff]
    %v1509 = vld [vmem:[%s11 + $0x1ec] sm:$0xff]
    %v1510 = vld [vmem:[%s11 + $0x1f4] sm:$0xf]
    %v1511 = vld [vmem:[%s11 + $0x1f8] sm:$0xff]
    %v1512 = vld [vmem:[%s11 + $0x200] sm:$0xff]
    %v1513 = vld [vmem:[%s11 + $0x208] sm:$0xff]
    %v1514 = vld [vmem:[%s11 + $0x210] sm:$0xf]
    %v1515 = vld [vmem:[%s11 + $0x214] sm:$0xff]
    %v1516 = vld [vmem:[%s11 + $0x21c] sm:$0xff]
    %v1517 = vld [vmem:[%s11 + $0x224] sm:$0xff]
    %v1518 = vld [vmem:[%s11 + $0x22c] sm:$0xf]
    %v1519 = vld [vmem:[%s11 + $0x230] sm:$0xff]
    %v1520 = vld [vmem:[%s11 + $0x238] sm:$0xff]
    %v1521 = vld [vmem:[%s11 + $0x240] sm:$0xff]
    %v1522 = vld [vmem:[%s11 + $0x248] sm:$0xf]
    %v1523 = vld [vmem:[%s11 + $0x24c] sm:$0xff]
    %v1524 = vld [vmem:[%s11 + $0x254] sm:$0xff]
    %v1525 = vld [vmem:[%s11 + $0x25c] sm:$0xff]
    %v1526 = vld [vmem:[%s11 + $0x264] sm:$0xf]
    %v1527 = vld [vmem:[%s11 + $0x268] sm:$0xff]
    %v1528 = vld [vmem:[%s11 + $0x270] sm:$0xff]
    %v1529 = vld [vmem:[%s11 + $0x278] sm:$0xff]
    %v1530 = vld [vmem:[%s11 + $0x280] sm:$0xf]
    %v1531 = vld [vmem:[%s11 + $0x284] sm:$0xff]
    %v1532 = vld [vmem:[%s11 + $0x28c] sm:$0xff]
    %v1533 = vld [vmem:[%s11 + $0x294] sm:$0xff]
    %v1534 = vld [vmem:[%s11 + $0x29c] sm:$0xf]
    %v1535 = vld [vmem:[%s11 + $0x2a0] sm:$0xff]
    %v1536 = vld [vmem:[%s11 + $0x2a8] sm:$0xff]
    %v1537 = vld [vmem:[%s11 + $0x2b0] sm:$0xff]
    %v1538 = vld [vmem:[%s11 + $0x2b8] sm:$0xf]
    %v1539 = vld [vmem:[%s11 + $0x2bc] sm:$0xff]
    %v1540 = vld [vmem:[%s11 + $0x2c4] sm:$0xff]
    %v1541 = vld [vmem:[%s11 + $0x2cc] sm:$0xff]
    %v1542 = vld [vmem:[%s11 + $0x2d4] sm:$0xf]
    %v1543 = vld [vmem:[%s11 + $0x2d8] sm:$0xff]
    %v1544 = vld [vmem:[%s11 + $0x2e0] sm:$0xff]
    %v1545 = vld [vmem:[%s11 + $0x2e8] sm:$0xff]
    %v1546 = vld [vmem:[%s11 + $0x2f0] sm:$0xf]
    %v1547 = vld [vmem:[%s11 + $0x2f4] sm:$0xff]
    %v1548 = vld [vmem:[%s11 + $0x2fc] sm:$0xff]
    %v1549 = vld [vmem:[%s11 + $0x304] sm:$0xff]
    %v1550 = vld [vmem:[%s11 + $0x30c] sm:$0xf]
    %v1551 = vld [vmem:[%s11 + $0x310] sm:$0xff]
    %v1552 = vld [vmem:[%s11 + $0x318] sm:$0xff]
    %v1553 = vld [vmem:[%s11 + $0x320] sm:$0xff]
    %v1554 = vld [vmem:[%s11 + $0x328] sm:$0xf]
    %v1555 = vld [vmem:[%s11 + $0x32c] sm:$0xff]
    %v1556 = vld [vmem:[%s11 + $0x334] sm:$0xff]
    %v1557 = vld [vmem:[%s11 + $0x33c] sm:$0xff]
    %v1558 = vld [vmem:[%s11 + $0x344] sm:$0xf]
    %v1559 = vld [vmem:[%s11 + $0x348] sm:$0xff]
    %v1560 = vld [vmem:[%s11 + $0x350] sm:$0xff]
    %v1561 = vld [vmem:[%s11 + $0x358] sm:$0xff]
    %v1562 = vld [vmem:[%s11 + $0x360] sm:$0xf]
    %v1563 = vld [vmem:[%s11 + $0x364] sm:$0xff]
    %v1564 = vld [vmem:[%s11 + $0x36c] sm:$0xff]
    %v1565 = vld [vmem:[%s11 + $0x374] sm:$0xff]
    %v1566 = vld [vmem:[%s11 + $0x37c] sm:$0xf]
    %v1567 = vld [vmem:[%s12] sm:$0x7f]
    %v1569 = vlaneseq
    %v1570 = vshrl.u32 %v1569, 7
    %v1571 = vsub.s32 0, %v1570
    %v1572 = vrot.slane %v1567, %v1571
    %v1573 = vlaneseq
    %v1574 = vshrl.u32 %v1573, 7
    %v1575 = vsub.s32 1, %v1574
    %v1576 = vrot.slane %v1567, %v1575
    %v1577 = vlaneseq
    %v1578 = vshrl.u32 %v1577, 7
    %v1579 = vsub.s32 2, %v1578
    %v1580 = vrot.slane %v1567, %v1579
    %v1581 = vlaneseq
    %v1582 = vshrl.u32 %v1581, 7
    %v1583 = vsub.s32 3, %v1582
    %v1584 = vrot.slane %v1567, %v1583
    %v1585 = vlaneseq
    %v1586 = vshrl.u32 %v1585, 7
    %v1587 = vsub.s32 4, %v1586
    %v1588 = vrot.slane %v1567, %v1587
    %v1589 = vlaneseq
    %v1590 = vshrl.u32 %v1589, 7
    %v1591 = vsub.s32 5, %v1590
    %v1592 = vrot.slane %v1567, %v1591
    %v1593 = vlaneseq
    %v1594 = vshrl.u32 %v1593, 7
    %v1595 = vsub.s32 6, %v1594
    %v1596 = vrot.slane %v1567, %v1595
    %v1732 = vunpack.c.l.b16 %v1439
    %v1733 = vunpack.c.h.b16 %v1439
    %v1734 = vunpack.c.l.b16 %v1440
    %v1735 = vunpack.c.h.b16 %v1440
    %v1736 = vunpack.c.l.b16 %v1441
    %v1737 = vunpack.c.h.b16 %v1441
    %v1738 = vunpack.c.l.b16 %v1442
    %v1739 = vunpack.c.l.b16 %v1443
    %v1740 = vunpack.c.h.b16 %v1443
    %v1741 = vunpack.c.l.b16 %v1444
    %v1742 = vunpack.c.h.b16 %v1444
    %v1743 = vunpack.c.l.b16 %v1445
    %v1744 = vunpack.c.h.b16 %v1445
    %v1745 = vunpack.c.l.b16 %v1446
    %v1746 = vunpack.c.l.b16 %v1447
    %v1747 = vunpack.c.h.b16 %v1447
    %v1748 = vunpack.c.l.b16 %v1448
    %v1749 = vunpack.c.h.b16 %v1448
    %v1750 = vunpack.c.l.b16 %v1449
    %v1751 = vunpack.c.h.b16 %v1449
    %v1752 = vunpack.c.l.b16 %v1450
    %v1753 = vunpack.c.l.b16 %v1451
    %v1754 = vunpack.c.h.b16 %v1451
    %v1755 = vunpack.c.l.b16 %v1452
    %v1756 = vunpack.c.h.b16 %v1452
    %v1757 = vunpack.c.l.b16 %v1453
    %v1758 = vunpack.c.h.b16 %v1453
    %v1759 = vunpack.c.l.b16 %v1454
    %v1760 = vunpack.c.l.b16 %v1455
    %v1761 = vunpack.c.h.b16 %v1455
    %v1762 = vunpack.c.l.b16 %v1456
    %v1763 = vunpack.c.h.b16 %v1456
    %v1764 = vunpack.c.l.b16 %v1457
    %v1765 = vunpack.c.h.b16 %v1457
    %v1766 = vunpack.c.l.b16 %v1458
    %v1767 = vunpack.c.l.b16 %v1459
    %v1768 = vunpack.c.h.b16 %v1459
    %v1769 = vunpack.c.l.b16 %v1460
    %v1770 = vunpack.c.h.b16 %v1460
    %v1771 = vunpack.c.l.b16 %v1461
    %v1772 = vunpack.c.h.b16 %v1461
    %v1773 = vunpack.c.l.b16 %v1462
    %v1774 = vunpack.c.l.b16 %v1463
    %v1775 = vunpack.c.h.b16 %v1463
    %v1776 = vunpack.c.l.b16 %v1464
    %v1777 = vunpack.c.h.b16 %v1464
    %v1778 = vunpack.c.l.b16 %v1465
    %v1779 = vunpack.c.h.b16 %v1465
    %v1780 = vunpack.c.l.b16 %v1466
    %v1781 = vunpack.c.l.b16 %v1467
    %v1782 = vunpack.c.h.b16 %v1467
    %v1783 = vunpack.c.l.b16 %v1468
    %v1784 = vunpack.c.h.b16 %v1468
    %v1785 = vunpack.c.l.b16 %v1469
    %v1786 = vunpack.c.h.b16 %v1469
    %v1787 = vunpack.c.l.b16 %v1470
    %v1788 = vunpack.c.l.b16 %v1471
    %v1789 = vunpack.c.h.b16 %v1471
    %v1790 = vunpack.c.l.b16 %v1472
    %v1791 = vunpack.c.h.b16 %v1472
    %v1792 = vunpack.c.l.b16 %v1473
    %v1793 = vunpack.c.h.b16 %v1473
    %v1794 = vunpack.c.l.b16 %v1474
    %v1795 = vunpack.c.l.b16 %v1475
    %v1796 = vunpack.c.h.b16 %v1475
    %v1797 = vunpack.c.l.b16 %v1476
    %v1798 = vunpack.c.h.b16 %v1476
    %v1799 = vunpack.c.l.b16 %v1477
    %v1800 = vunpack.c.h.b16 %v1477
    %v1801 = vunpack.c.l.b16 %v1478
    %v1802 = vunpack.c.l.b16 %v1479
    %v1803 = vunpack.c.h.b16 %v1479
    %v1804 = vunpack.c.l.b16 %v1480
    %v1805 = vunpack.c.h.b16 %v1480
    %v1806 = vunpack.c.l.b16 %v1481
    %v1807 = vunpack.c.h.b16 %v1481
    %v1808 = vunpack.c.l.b16 %v1482
    %v1809 = vunpack.c.l.b16 %v1483
    %v1810 = vunpack.c.h.b16 %v1483
    %v1811 = vunpack.c.l.b16 %v1484
    %v1812 = vunpack.c.h.b16 %v1484
    %v1813 = vunpack.c.l.b16 %v1485
    %v1814 = vunpack.c.h.b16 %v1485
    %v1815 = vunpack.c.l.b16 %v1486
    %v1816 = vunpack.c.l.b16 %v1487
    %v1817 = vunpack.c.h.b16 %v1487
    %v1818 = vunpack.c.l.b16 %v1488
    %v1819 = vunpack.c.h.b16 %v1488
    %v1820 = vunpack.c.l.b16 %v1489
    %v1821 = vunpack.c.h.b16 %v1489
    %v1822 = vunpack.c.l.b16 %v1490
    %v1823 = vunpack.c.l.b16 %v1491
    %v1824 = vunpack.c.h.b16 %v1491
    %v1825 = vunpack.c.l.b16 %v1492
    %v1826 = vunpack.c.h.b16 %v1492
    %v1827 = vunpack.c.l.b16 %v1493
    %v1828 = vunpack.c.h.b16 %v1493
    %v1829 = vunpack.c.l.b16 %v1494
    %v1830 = vunpack.c.l.b16 %v1495
    %v1831 = vunpack.c.h.b16 %v1495
    %v1832 = vunpack.c.l.b16 %v1496
    %v1833 = vunpack.c.h.b16 %v1496
    %v1834 = vunpack.c.l.b16 %v1497
    %v1835 = vunpack.c.h.b16 %v1497
    %v1836 = vunpack.c.l.b16 %v1498
    %v1837 = vunpack.c.l.b16 %v1499
    %v1838 = vunpack.c.h.b16 %v1499
    %v1839 = vunpack.c.l.b16 %v1500
    %v1840 = vunpack.c.h.b16 %v1500
    %v1841 = vunpack.c.l.b16 %v1501
    %v1842 = vunpack.c.h.b16 %v1501
    %v1843 = vunpack.c.l.b16 %v1502
    %v1844 = vunpack.c.l.b16 %v1503
    %v1845 = vunpack.c.h.b16 %v1503
    %v1846 = vunpack.c.l.b16 %v1504
    %v1847 = vunpack.c.h.b16 %v1504
    %v1848 = vunpack.c.l.b16 %v1505
    %v1849 = vunpack.c.h.b16 %v1505
    %v1850 = vunpack.c.l.b16 %v1506
    %v1851 = vunpack.c.l.b16 %v1507
    %v1852 = vunpack.c.h.b16 %v1507
    %v1853 = vunpack.c.l.b16 %v1508
    %v1854 = vunpack.c.h.b16 %v1508
    %v1855 = vunpack.c.l.b16 %v1509
    %v1856 = vunpack.c.h.b16 %v1509
    %v1857 = vunpack.c.l.b16 %v1510
    %v1858 = vunpack.c.l.b16 %v1511
    %v1859 = vunpack.c.h.b16 %v1511
    %v1860 = vunpack.c.l.b16 %v1512
    %v1861 = vunpack.c.h.b16 %v1512
    %v1862 = vunpack.c.l.b16 %v1513
    %v1863 = vunpack.c.h.b16 %v1513
    %v1864 = vunpack.c.l.b16 %v1514
    %v1865 = vunpack.c.l.b16 %v1515
    %v1866 = vunpack.c.h.b16 %v1515
    %v1867 = vunpack.c.l.b16 %v1516
    %v1868 = vunpack.c.h.b16 %v1516
    %v1869 = vunpack.c.l.b16 %v1517
    %v1870 = vunpack.c.h.b16 %v1517
    %v1871 = vunpack.c.l.b16 %v1518
    %v1872 = vunpack.c.l.b16 %v1519
    %v1873 = vunpack.c.h.b16 %v1519
    %v1874 = vunpack.c.l.b16 %v1520
    %v1875 = vunpack.c.h.b16 %v1520
    %v1876 = vunpack.c.l.b16 %v1521
    %v1877 = vunpack.c.h.b16 %v1521
    %v1878 = vunpack.c.l.b16 %v1522
    %v1879 = vunpack.c.l.b16 %v1523
    %v1880 = vunpack.c.h.b16 %v1523
    %v1881 = vunpack.c.l.b16 %v1524
    %v1882 = vunpack.c.h.b16 %v1524
    %v1883 = vunpack.c.l.b16 %v1525
    %v1884 = vunpack.c.h.b16 %v1525
    %v1885 = vunpack.c.l.b16 %v1526
    %v1886 = vunpack.c.l.b16 %v1527
    %v1887 = vunpack.c.h.b16 %v1527
    %v1888 = vunpack.c.l.b16 %v1528
    %v1889 = vunpack.c.h.b16 %v1528
    %v1890 = vunpack.c.l.b16 %v1529
    %v1891 = vunpack.c.h.b16 %v1529
    %v1892 = vunpack.c.l.b16 %v1530
    %v1893 = vunpack.c.l.b16 %v1531
    %v1894 = vunpack.c.h.b16 %v1531
    %v1895 = vunpack.c.l.b16 %v1532
    %v1896 = vunpack.c.h.b16 %v1532
    %v1897 = vunpack.c.l.b16 %v1533
    %v1898 = vunpack.c.h.b16 %v1533
    %v1899 = vunpack.c.l.b16 %v1534
    %v1900 = vunpack.c.l.b16 %v1535
    %v1901 = vunpack.c.h.b16 %v1535
    %v1902 = vunpack.c.l.b16 %v1536
    %v1903 = vunpack.c.h.b16 %v1536
    %v1904 = vunpack.c.l.b16 %v1537
    %v1905 = vunpack.c.h.b16 %v1537
    %v1906 = vunpack.c.l.b16 %v1538
    %v1907 = vunpack.c.l.b16 %v1539
    %v1908 = vunpack.c.h.b16 %v1539
    %v1909 = vunpack.c.l.b16 %v1540
    %v1910 = vunpack.c.h.b16 %v1540
    %v1911 = vunpack.c.l.b16 %v1541
    %v1912 = vunpack.c.h.b16 %v1541
    %v1913 = vunpack.c.l.b16 %v1542
    %v1914 = vunpack.c.l.b16 %v1543
    %v1915 = vunpack.c.h.b16 %v1543
    %v1916 = vunpack.c.l.b16 %v1544
    %v1917 = vunpack.c.h.b16 %v1544
    %v1918 = vunpack.c.l.b16 %v1545
    %v1919 = vunpack.c.h.b16 %v1545
    %v1920 = vunpack.c.l.b16 %v1546
    %v1921 = vunpack.c.l.b16 %v1547
    %v1922 = vunpack.c.h.b16 %v1547
    %v1923 = vunpack.c.l.b16 %v1548
    %v1924 = vunpack.c.h.b16 %v1548
    %v1925 = vunpack.c.l.b16 %v1549
    %v1926 = vunpack.c.h.b16 %v1549
    %v1927 = vunpack.c.l.b16 %v1550
    %v1928 = vunpack.c.l.b16 %v1551
    %v1929 = vunpack.c.h.b16 %v1551
    %v1930 = vunpack.c.l.b16 %v1552
    %v1931 = vunpack.c.h.b16 %v1552
    %v1932 = vunpack.c.l.b16 %v1553
    %v1933 = vunpack.c.h.b16 %v1553
    %v1934 = vunpack.c.l.b16 %v1554
    %v1935 = vunpack.c.l.b16 %v1555
    %v1936 = vunpack.c.h.b16 %v1555
    %v1937 = vunpack.c.l.b16 %v1556
    %v1938 = vunpack.c.h.b16 %v1556
    %v1939 = vunpack.c.l.b16 %v1557
    %v1940 = vunpack.c.h.b16 %v1557
    %v1941 = vunpack.c.l.b16 %v1558
    %v1942 = vunpack.c.l.b16 %v1559
    %v1943 = vunpack.c.h.b16 %v1559
    %v1944 = vunpack.c.l.b16 %v1560
    %v1945 = vunpack.c.h.b16 %v1560
    %v1946 = vunpack.c.l.b16 %v1561
    %v1947 = vunpack.c.h.b16 %v1561
    %v1948 = vunpack.c.l.b16 %v1562
    %v1949 = vunpack.c.l.b16 %v1563
    %v1950 = vunpack.c.h.b16 %v1563
    %v1951 = vunpack.c.l.b16 %v1564
    %v1952 = vunpack.c.h.b16 %v1564
    %v1953 = vunpack.c.l.b16 %v1565
    %v1954 = vunpack.c.h.b16 %v1565
    %v1955 = vunpack.c.l.b16 %v1566
    %v1956 = vpack.c.b16 %v1739, %v1732
    %v1957 = vpack.c.b16 %v1740, %v1733
    %v1958 = vpack.c.b16 %v1741, %v1734
    %v1959 = vpack.c.b16 %v1742, %v1735
    %v1960 = vpack.c.b16 %v1743, %v1736
    %v1961 = vpack.c.b16 %v1744, %v1737
    %v1962 = vpack.c.b16 %v1745, %v1738
    %v1963 = vpack.c.b16 %v1753, %v1746
    %v1964 = vpack.c.b16 %v1754, %v1747
    %v1965 = vpack.c.b16 %v1755, %v1748
    %v1966 = vpack.c.b16 %v1756, %v1749
    %v1967 = vpack.c.b16 %v1757, %v1750
    %v1968 = vpack.c.b16 %v1758, %v1751
    %v1969 = vpack.c.b16 %v1759, %v1752
    %v1970 = vpack.c.b16 %v1767, %v1760
    %v1971 = vpack.c.b16 %v1768, %v1761
    %v1972 = vpack.c.b16 %v1769, %v1762
    %v1973 = vpack.c.b16 %v1770, %v1763
    %v1974 = vpack.c.b16 %v1771, %v1764
    %v1975 = vpack.c.b16 %v1772, %v1765
    %v1976 = vpack.c.b16 %v1773, %v1766
    %v1977 = vpack.c.b16 %v1781, %v1774
    %v1978 = vpack.c.b16 %v1782, %v1775
    %v1979 = vpack.c.b16 %v1783, %v1776
    %v1980 = vpack.c.b16 %v1784, %v1777
    %v1981 = vpack.c.b16 %v1785, %v1778
    %v1982 = vpack.c.b16 %v1786, %v1779
    %v1983 = vpack.c.b16 %v1787, %v1780
    %v1984 = vpack.c.b16 %v1795, %v1788
    %v1985 = vpack.c.b16 %v1796, %v1789
    %v1986 = vpack.c.b16 %v1797, %v1790
    %v1987 = vpack.c.b16 %v1798, %v1791
    %v1988 = vpack.c.b16 %v1799, %v1792
    %v1989 = vpack.c.b16 %v1800, %v1793
    %v1990 = vpack.c.b16 %v1801, %v1794
    %v1991 = vpack.c.b16 %v1809, %v1802
    %v1992 = vpack.c.b16 %v1810, %v1803
    %v1993 = vpack.c.b16 %v1811, %v1804
    %v1994 = vpack.c.b16 %v1812, %v1805
    %v1995 = vpack.c.b16 %v1813, %v1806
    %v1996 = vpack.c.b16 %v1814, %v1807
    %v1997 = vpack.c.b16 %v1815, %v1808
    %v1998 = vpack.c.b16 %v1823, %v1816
    %v1999 = vpack.c.b16 %v1824, %v1817
    %v2000 = vpack.c.b16 %v1825, %v1818
    %v2001 = vpack.c.b16 %v1826, %v1819
    %v2002 = vpack.c.b16 %v1827, %v1820
    %v2003 = vpack.c.b16 %v1828, %v1821
    %v2004 = vpack.c.b16 %v1829, %v1822
    %v2005 = vpack.c.b16 %v1837, %v1830
    %v2006 = vpack.c.b16 %v1838, %v1831
    %v2007 = vpack.c.b16 %v1839, %v1832
    %v2008 = vpack.c.b16 %v1840, %v1833
    %v2009 = vpack.c.b16 %v1841, %v1834
    %v2010 = vpack.c.b16 %v1842, %v1835
    %v2011 = vpack.c.b16 %v1843, %v1836
    %v2012 = vpack.c.b16 %v1851, %v1844
    %v2013 = vpack.c.b16 %v1852, %v1845
    %v2014 = vpack.c.b16 %v1853, %v1846
    %v2015 = vpack.c.b16 %v1854, %v1847
    %v2016 = vpack.c.b16 %v1855, %v1848
    %v2017 = vpack.c.b16 %v1856, %v1849
    %v2018 = vpack.c.b16 %v1857, %v1850
    %v2019 = vpack.c.b16 %v1865, %v1858
    %v2020 = vpack.c.b16 %v1866, %v1859
    %v2021 = vpack.c.b16 %v1867, %v1860
    %v2022 = vpack.c.b16 %v1868, %v1861
    %v2023 = vpack.c.b16 %v1869, %v1862
    %v2024 = vpack.c.b16 %v1870, %v1863
    %v2025 = vpack.c.b16 %v1871, %v1864
    %v2026 = vpack.c.b16 %v1879, %v1872
    %v2027 = vpack.c.b16 %v1880, %v1873
    %v2028 = vpack.c.b16 %v1881, %v1874
    %v2029 = vpack.c.b16 %v1882, %v1875
    %v2030 = vpack.c.b16 %v1883, %v1876
    %v2031 = vpack.c.b16 %v1884, %v1877
    %v2032 = vpack.c.b16 %v1885, %v1878
    %v2033 = vpack.c.b16 %v1893, %v1886
    %v2034 = vpack.c.b16 %v1894, %v1887
    %v2035 = vpack.c.b16 %v1895, %v1888
    %v2036 = vpack.c.b16 %v1896, %v1889
    %v2037 = vpack.c.b16 %v1897, %v1890
    %v2038 = vpack.c.b16 %v1898, %v1891
    %v2039 = vpack.c.b16 %v1899, %v1892
    %v2040 = vpack.c.b16 %v1907, %v1900
    %v2041 = vpack.c.b16 %v1908, %v1901
    %v2042 = vpack.c.b16 %v1909, %v1902
    %v2043 = vpack.c.b16 %v1910, %v1903
    %v2044 = vpack.c.b16 %v1911, %v1904
    %v2045 = vpack.c.b16 %v1912, %v1905
    %v2046 = vpack.c.b16 %v1913, %v1906
    %v2047 = vpack.c.b16 %v1921, %v1914
    %v2048 = vpack.c.b16 %v1922, %v1915
    %v2049 = vpack.c.b16 %v1923, %v1916
    %v2050 = vpack.c.b16 %v1924, %v1917
    %v2051 = vpack.c.b16 %v1925, %v1918
    %v2052 = vpack.c.b16 %v1926, %v1919
    %v2053 = vpack.c.b16 %v1927, %v1920
    %v2054 = vpack.c.b16 %v1935, %v1928
    %v2055 = vpack.c.b16 %v1936, %v1929
    %v2056 = vpack.c.b16 %v1937, %v1930
    %v2057 = vpack.c.b16 %v1938, %v1931
    %v2058 = vpack.c.b16 %v1939, %v1932
    %v2059 = vpack.c.b16 %v1940, %v1933
    %v2060 = vpack.c.b16 %v1941, %v1934
    %v2061 = vpack.c.b16 %v1949, %v1942
    %v2062 = vpack.c.b16 %v1950, %v1943
    %v2063 = vpack.c.b16 %v1951, %v1944
    %v2064 = vpack.c.b16 %v1952, %v1945
    %v2065 = vpack.c.b16 %v1953, %v1946
    %v2066 = vpack.c.b16 %v1954, %v1947
    %v2067 = vpack.c.b16 %v1955, %v1948
    %2180 = vmatprep.subr.bf16.mxu0 %v1957
    %2181 = vmatpush1.bf16.msra.mxu0 %v1956
    %2182 = vmatprep.subr.bf16.mxu0 %v1964
    %2183 = vmatpush1.bf16.msra.mxu0 %v1963
    %2184 = vmatprep.subr.bf16.mxu0 %v1971
    %2185 = vmatpush1.bf16.msra.mxu0 %v1970
    %2186 = vmatprep.subr.bf16.mxu0 %v1978
    %2187 = vmatpush1.bf16.msra.mxu0 %v1977
    %2188 = vmatprep.subr.bf16.mxu0 %v1985
    %2189 = vmatpush1.bf16.msra.mxu0 %v1984
    %2190 = vmatprep.subr.bf16.mxu0 %v1992
    %2191 = vmatpush1.bf16.msra.mxu0 %v1991
    %2192 = vmatprep.subr.bf16.mxu0 %v1999
    %2193 = vmatpush1.bf16.msra.mxu0 %v1998
    %2194 = vmatprep.subr.bf16.mxu0 %v2006
    %2195 = vmatpush1.bf16.msra.mxu0 %v2005
    %2196 = vmatprep.subr.bf16.mxu0 %v2013
    %2197 = vmatpush1.bf16.msra.mxu0 %v2012
    %2198 = vmatprep.subr.bf16.mxu0 %v2020
    %2199 = vmatpush1.bf16.msra.mxu0 %v2019
    %2200 = vmatprep.subr.bf16.mxu0 %v2027
    %2201 = vmatpush1.bf16.msra.mxu0 %v2026
    %2202 = vmatprep.subr.bf16.mxu0 %v2034
    %2203 = vmatpush1.bf16.msra.mxu0 %v2033
    %2204 = vmatprep.subr.bf16.mxu0 %v2041
    %2205 = vmatpush1.bf16.msra.mxu0 %v2040
    %2206 = vmatprep.subr.bf16.mxu0 %v2048
    %2207 = vmatpush1.bf16.msra.mxu0 %v2047
    %2208 = vmatprep.subr.bf16.mxu0 %v2055
    %2209 = vmatpush1.bf16.msra.mxu0 %v2054
    %2210 = vmatprep.subr.bf16.mxu0 %v2062
    %2211 = vmatpush1.bf16.msra.mxu0 %v2061
    %2212 = vmatprep.mubr.bf16.mxu0 %v1438
    %2213 = vmatmul.mubr.bf16.gmra.mrb[0].mxu0 %v1437
    %v2214 = vpop.f32.mrb[0].mxu0
    %v2215 = vadd.f32 %v1572, %v2214
    %v2216 = vpop.f32.mrb[0].mxu0
    %v2217 = vadd.f32 %v1576, %v2216
    %v2218 = vpop.f32.mrb[0].mxu0
    %v2219 = vpop.f32.mrb[0].mxu0
    %2220 = vdwg.mxu0
    %2221 = vmatprep.subr.bf16.mxu0 %v1959
    %2222 = vmatpush1.bf16.msra.mxu0 %v1958
    %2223 = vmatprep.subr.bf16.mxu0 %v1966
    %2224 = vmatpush1.bf16.msra.mxu0 %v1965
    %2225 = vmatprep.subr.bf16.mxu0 %v1973
    %2226 = vmatpush1.bf16.msra.mxu0 %v1972
    %2227 = vmatprep.subr.bf16.mxu0 %v1980
    %2228 = vmatpush1.bf16.msra.mxu0 %v1979
    %2229 = vmatprep.subr.bf16.mxu0 %v1987
    %2230 = vmatpush1.bf16.msra.mxu0 %v1986
    %2231 = vmatprep.subr.bf16.mxu0 %v1994
    %2232 = vmatpush1.bf16.msra.mxu0 %v1993
    %2233 = vmatprep.subr.bf16.mxu0 %v2001
    %2234 = vmatpush1.bf16.msra.mxu0 %v2000
    %2235 = vmatprep.subr.bf16.mxu0 %v2008
    %2236 = vmatpush1.bf16.msra.mxu0 %v2007
    %2237 = vmatprep.subr.bf16.mxu0 %v2015
    %2238 = vmatpush1.bf16.msra.mxu0 %v2014
    %2239 = vmatprep.subr.bf16.mxu0 %v2022
    %2240 = vmatpush1.bf16.msra.mxu0 %v2021
    %2241 = vmatprep.subr.bf16.mxu0 %v2029
    %2242 = vmatpush1.bf16.msra.mxu0 %v2028
    %2243 = vmatprep.subr.bf16.mxu0 %v2036
    %2244 = vmatpush1.bf16.msra.mxu0 %v2035
    %2245 = vmatprep.subr.bf16.mxu0 %v2043
    %2246 = vmatpush1.bf16.msra.mxu0 %v2042
    %2247 = vmatprep.subr.bf16.mxu0 %v2050
    %2248 = vmatpush1.bf16.msra.mxu0 %v2049
    %2249 = vmatprep.subr.bf16.mxu0 %v2057
    %2250 = vmatpush1.bf16.msra.mxu0 %v2056
    %2251 = vmatprep.subr.bf16.mxu0 %v2064
    %2252 = vmatpush1.bf16.msra.mxu0 %v2063
    %2253 = vmatprep.mubr.bf16.mxu0 %v1438
    %2254 = vmatmul.mubr.bf16.gmra.mrb[0].mxu0 %v1437
    %v2255 = vpop.f32.mrb[0].mxu0
    %v2256 = vadd.f32 %v1580, %v2255
    %v2257 = vpop.f32.mrb[0].mxu0
    %v2258 = vadd.f32 %v1584, %v2257
    %v2259 = vpop.f32.mrb[0].mxu0
    %v2260 = vpop.f32.mrb[0].mxu0
    %2261 = vdwg.mxu0
    %2262 = vmatprep.subr.bf16.mxu0 %v1961
    %2263 = vmatpush1.bf16.msra.mxu0 %v1960
    %2264 = vmatprep.subr.bf16.mxu0 %v1968
    %2265 = vmatpush1.bf16.msra.mxu0 %v1967
    %2266 = vmatprep.subr.bf16.mxu0 %v1975
    %2267 = vmatpush1.bf16.msra.mxu0 %v1974
    %2268 = vmatprep.subr.bf16.mxu0 %v1982
    %2269 = vmatpush1.bf16.msra.mxu0 %v1981
    %2270 = vmatprep.subr.bf16.mxu0 %v1989
    %2271 = vmatpush1.bf16.msra.mxu0 %v1988
    %2272 = vmatprep.subr.bf16.mxu0 %v1996
    %2273 = vmatpush1.bf16.msra.mxu0 %v1995
    %2274 = vmatprep.subr.bf16.mxu0 %v2003
    %2275 = vmatpush1.bf16.msra.mxu0 %v2002
    %2276 = vmatprep.subr.bf16.mxu0 %v2010
    %2277 = vmatpush1.bf16.msra.mxu0 %v2009
    %2278 = vmatprep.subr.bf16.mxu0 %v2017
    %2279 = vmatpush1.bf16.msra.mxu0 %v2016
    %2280 = vmatprep.subr.bf16.mxu0 %v2024
    %2281 = vmatpush1.bf16.msra.mxu0 %v2023
    %2282 = vmatprep.subr.bf16.mxu0 %v2031
    %2283 = vmatpush1.bf16.msra.mxu0 %v2030
    %2284 = vmatprep.subr.bf16.mxu0 %v2038
    %2285 = vmatpush1.bf16.msra.mxu0 %v2037
    %2286 = vmatprep.subr.bf16.mxu0 %v2045
    %2287 = vmatpush1.bf16.msra.mxu0 %v2044
    %2288 = vmatprep.subr.bf16.mxu0 %v2052
    %2289 = vmatpush1.bf16.msra.mxu0 %v2051
    %2290 = vmatprep.subr.bf16.mxu0 %v2059
    %2291 = vmatpush1.bf16.msra.mxu0 %v2058
    %2292 = vmatprep.subr.bf16.mxu0 %v2066
    %2293 = vmatpush1.bf16.msra.mxu0 %v2065
    %2294 = vmatprep.mubr.bf16.mxu0 %v1438
    %2295 = vmatmul.mubr.bf16.gmra.mrb[0].mxu0 %v1437
    %v2296 = vpop.f32.mrb[0].mxu0
    %v2297 = vadd.f32 %v1588, %v2296
    %v2298 = vpop.f32.mrb[0].mxu0
    %v2299 = vadd.f32 %v1592, %v2298
    %v2300 = vpop.f32.mrb[0].mxu0
    %v2301 = vpop.f32.mrb[0].mxu0
    %2302 = vdwg.mxu0
    %2303 = vmatprep.subr.bf16.mxu0 0
    %2304 = vmatpush1.bf16.msra.mxu0 %v1962
    %2305 = vmatprep.subr.bf16.mxu0 0
    %2306 = vmatpush1.bf16.msra.mxu0 %v1969
    %2307 = vmatprep.subr.bf16.mxu0 0
    %2308 = vmatpush1.bf16.msra.mxu0 %v1976
    %2309 = vmatprep.subr.bf16.mxu0 0
    %2310 = vmatpush1.bf16.msra.mxu0 %v1983
    %2311 = vmatprep.subr.bf16.mxu0 0
    %2312 = vmatpush1.bf16.msra.mxu0 %v1990
    %2313 = vmatprep.subr.bf16.mxu0 0
    %2314 = vmatpush1.bf16.msra.mxu0 %v1997
    %2315 = vmatprep.subr.bf16.mxu0 0
    %2316 = vmatpush1.bf16.msra.mxu0 %v2004
    %2317 = vmatprep.subr.bf16.mxu0 0
    %2318 = vmatpush1.bf16.msra.mxu0 %v2011
    %2319 = vmatprep.subr.bf16.mxu0 0
    %2320 = vmatpush1.bf16.msra.mxu0 %v2018
    %2321 = vmatprep.subr.bf16.mxu0 0
    %2322 = vmatpush1.bf16.msra.mxu0 %v2025
    %2323 = vmatprep.subr.bf16.mxu0 0
    %2324 = vmatpush1.bf16.msra.mxu0 %v2032
    %2325 = vmatprep.subr.bf16.mxu0 0
    %2326 = vmatpush1.bf16.msra.mxu0 %v2039
    %2327 = vmatprep.subr.bf16.mxu0 0
    %2328 = vmatpush1.bf16.msra.mxu0 %v2046
    %2329 = vmatprep.subr.bf16.mxu0 0
    %2330 = vmatpush1.bf16.msra.mxu0 %v2053
    %2331 = vmatprep.subr.bf16.mxu0 0
    %2332 = vmatpush1.bf16.msra.mxu0 %v2060
    %2333 = vmatprep.subr.bf16.mxu0 0
    %2334 = vmatpush1.bf16.msra.mxu0 %v2067
    %2335 = vmatprep.mubr.bf16.mxu0 %v1438
    %2336 = vmatmul.mubr.bf16.gmra.mrb[0].mxu0 %v1437
    %v2337 = vpop.f32.mrb[0].mxu0
    %v2338 = vadd.f32 %v1596, %v2337
    %v2339 = vpop.f32.mrb[0].mxu0
    %v2340 = vpop.f32.mrb[0].mxu0
    %v2341 = vpop.f32.mrb[0].mxu0
    %2342 = vdwg.mxu0
    %v2343 = vsub.f32 0.0, %v2215
    %v2344 = vsub.f32 0.0, %v2217
    %v2345 = vsub.f32 0.0, %v2256
    %v2346 = vsub.f32 0.0, %v2258
    %v2347 = vsub.f32 0.0, %v2297
    %v2348 = vsub.f32 0.0, %v2299
    %v2349 = vsub.f32 0.0, %v2338
    %v2350 = vmul.f32 %v2343, 1.442695
    %v2351 = vpow.pop %v2350
    %v2352 = vmul.f32 %v2344, 1.442695
    %v2353 = vpow.pop %v2352
    %v2354 = vmul.f32 %v2345, 1.442695
    %v2355 = vpow.pop %v2354
    %v2356 = vmul.f32 %v2346, 1.442695
    %v2357 = vpow.pop %v2356
    %v2358 = vmul.f32 %v2347, 1.442695
    %v2359 = vpow.pop %v2358
    %v2360 = vmul.f32 %v2348, 1.442695
    %v2361 = vpow.pop %v2360
    %v2362 = vmul.f32 %v2349, 1.442695
    %v2363 = vpow.pop %v2362
    %v2364 = vadd.f32 %v2351, 1.0
    %v2365 = vadd.f32 %v2353, 1.0
    %v2366 = vadd.f32 %v2355, 1.0
    %v2367 = vadd.f32 %v2357, 1.0
    %v2368 = vadd.f32 %v2359, 1.0
    %v2369 = vadd.f32 %v2361, 1.0
    %v2370 = vadd.f32 %v2363, 1.0
    %v2371 = vrcp.pop %v2364
    %v2372 = vrcp.pop %v2365
    %v2373 = vrcp.pop %v2366
    %v2374 = vrcp.pop %v2367
    %v2375 = vrcp.pop %v2368
    %v2376 = vrcp.pop %v2369
    %v2377 = vrcp.pop %v2370
    %v2385 = vcombine.low %v2371, %v2372
    %v2386 = vcombine.low %v2373, %v2374
    %v2388 = vunpack.c.l.s4 1983009808
    %v2389 = vunpack.c.0.s8 %v2388
    %v2390 = vlaneseq
    %v2391 = vshrl.u32 %v2390, 7
    %v2392 = vsub.s32 %v2389, %v2391
    %v2393 = vrot.slane %v2385, %v2392
    %v2395 = vunpack.c.l.s4 1983009808
    %v2396 = vunpack.c.0.s8 %v2395
    %v2397 = vlaneseq
    %v2398 = vshrl.u32 %v2397, 7
    %v2399 = vsub.s32 %v2396, %v2398
    %v2400 = vrot.slane %v2386, %v2399
    %v2401 = vcombine.low %v2393, %v2400
    %v2402 = vcombine.low %v2375, %v2376
    %v2404 = vunpack.c.l.s4 1983009808
    %v2405 = vunpack.c.0.s8 %v2404
    %v2406 = vlaneseq
    %v2407 = vshrl.u32 %v2406, 7
    %v2408 = vsub.s32 %v2405, %v2407
    %v2409 = vrot.slane %v2402, %v2408
    %v2411 = vunpack.c.l.s4 1983009808
    %v2412 = vunpack.c.0.s8 %v2411
    %v2413 = vlaneseq
    %v2414 = vshrl.u32 %v2413, 7
    %v2415 = vsub.s32 %v2412, %v2414
    %v2416 = vrot.slane %v2377, %v2415
    %v2417 = vcombine.low %v2409, %v2416
    %2420 = vst [vmem:[#allocation2] sm:$0xff] %v2401
    %vm2421 = vcmask 1041408
    %vm2422 = vcmask 1043458
    %vm2423 = vmor %vm2422, %vm2421
    %vm2424 = vcmask 128004
    %vm2425 = vmor %vm2424, %vm2423
    %2426 = vst.msk [vmem:[#allocation2 + $0x8] sm:$0x3f] %vm2425, %v2417
    // Predicated region
    $region54: #{tpu_custom_call.1} parent=1 // pred_check
      _
    $region55: #{tpu_custom_call.1} parent=1 // pred_check_branch
      %2428 = sbr.rel (0) target = $region57
    $region56: #{tpu_custom_call.1} parent=1 // pred_region
      %s2430 = ssub.s32 224, 224
      %2431 = vsyncadd [#allocation3], %s2430
      %s2433 = sshll.u32 [#allocation2], 4
      %s2434 = int_to_ptr.vmem [resolvable:$true] %s2433
      %2436 = dma.vmem_to_hbm [thread:$0]  %s2434, 224, %s13, [#allocation3]
    $region57: #{tpu_custom_call.1} parent=1 // pred_fallthru
      _
    // Predicated region
    $region58: #{tpu_custom_call.1} parent=1 // pred_check
      _
    $region59: #{tpu_custom_call.1} parent=1 // pred_check_branch
      %2438 = sbr.rel (0) target = $region61
    $region60: #{tpu_custom_call.1} parent=1 // pred_region
      %2439 = dma.done [#allocation3], 224
    $region61: #{tpu_custom_call.1} parent=1 // pred_fallthru
      _
    %2440 = vsyncpa [#allocation3], 1

</llo_original>
